<compile_context>
chip_gen: v7x
topology: tpu7x:2x2x1
jax: 0.10.0
libtpu: 0.0.40
codegen_flags: <defaults>
</compile_context>

<pallas_src>
import math
import functools

import jax
import jax.numpy as jnp
from jax import lax
from jax.experimental import pallas as pl
from jax.experimental.pallas import tpu as pltpu

LN_EPS = 1e-5            # torch.nn.LayerNorm default
ROW_TILE_CAP = 256       # target rows per block (multiple of seq_len for attention)
FF_TILE_CAP = 512        # lane-dense FF inner-dim tile (sweep 512-1024 on v5e/v6e)
VOCAB_TILE_CAP = 512     # lane-dense vocab tile
NEG_BIG = -1e30          # causal-mask fill (bf16-representable, exp() underflows to 0)


@functools.lru_cache(maxsize=None)
def _vmem_limit_bytes():
    """Per-generation scoped-VMEM budget: 3/4 of capacity, capped at 96 MiB
    (~48 MiB on v7x's 64 MiB VMEM, 96 MiB on v5e/v6e's 128 MiB)."""
    try:
        cap = int(pltpu.get_tpu_info().vmem_capacity_bytes)
    except Exception:
        cap = 64 << 20
    if cap < (32 << 20):
        cap = 64 << 20
    return int(min(cap * 3 // 4, 96 << 20))


# ---------------------------------------------------------------------------
# In-kernel helpers (f32 elementwise math)
# ---------------------------------------------------------------------------
def _layernorm(x, g, b):
    mu = jnp.mean(x, axis=-1, keepdims=True)
    var = jnp.mean((x - mu) ** 2, axis=-1, keepdims=True)   # biased var (torch)
    return (x - mu) * lax.rsqrt(var + LN_EPS) * g + b


def _gelu_exact(x):
    # torch.nn.functional.gelu default (erf form)
    return 0.5 * x * (1.0 + lax.erf(x * (1.0 / math.sqrt(2.0))))


# ---------------------------------------------------------------------------
# Fused transformer layer kernel
#   grid = (rows // row_tile, ff_inner // ff_tile)
#   t == 0    : PreNorm MQA attention + residual -> o_ref (resident), LN2 -> scratch
#   every t   : one GEGLU-FF inner-dim tile, accumulated in f32 scratch
#   t == last : o_ref = y1 + FF(y1)
# ---------------------------------------------------------------------------
def transformer_layer_kernel(x_ref, ln1g_ref, ln1b_ref, wq_ref, wkv_ref, wo_ref,
                             bo_ref, bias_ref, ln2g_ref, ln2b_ref,
                             w1a_ref, b1a_ref, w1g_ref, b1g_ref, w2_ref, b2_ref,
                             o_ref, xn2_scr, acc_scr,
                             *, heads, dim_head, seq_len):
    t = pl.program_id(1)

    @pl.when(t == 0)
    def _attention_and_init():
        x = x_ref[...].astype(jnp.float32)                      # (RT, D), RT = nb*seq_len
        rt = x.shape[0]
        nb = rt // seq_len                                       # sequences in this block
        xn = _layernorm(x, ln1g_ref[...], ln1b_ref[...]).astype(jnp.bfloat16)

        # Projections over ALL rows of the block at once (large-M MXU passes).
        q = jnp.dot(xn, wq_ref[...], preferred_element_type=jnp.float32)    # (RT, H*d)
        kv = jnp.dot(xn, wkv_ref[...], preferred_element_type=jnp.float32)  # (RT, 2d)
        q = q.astype(jnp.bfloat16)                  # dim_head**-0.5 folded into wq
        k = kv[:, :dim_head].astype(jnp.bfloat16)   # (RT, d)  multi-query: shared heads
        v = kv[:, dim_head:].astype(jnp.bfloat16)   # (RT, d)

        # Precomputed T5 bias with causal mask + sqrt(d) scale folded in (bf16).
        bias = bias_ref[...].astype(jnp.float32)                 # (H*N, N)

        # Per-sequence attention (static unrolled loop); heads batched into rows
        # so score / value matmuls are one MXU op each per sequence.
        outs = []
        for bi in range(nb):
            r0 = bi * seq_len
            q_b = q[r0:r0 + seq_len, :]                          # (N, H*d)
            k_b = k[r0:r0 + seq_len, :]                          # (N, d)
            v_b = v[r0:r0 + seq_len, :]                          # (N, d)
            qh = jnp.concatenate(
                [q_b[:, h * dim_head:(h + 1) * dim_head] for h in range(heads)],
                axis=0)                                          # (H*N, d)
            sim = lax.dot_general(qh, k_b, (((1,), (1,)), ((), ())),
                                  preferred_element_type=jnp.float32) + bias
            m = jnp.max(sim, axis=-1, keepdims=True)
            e = jnp.exp(sim - m)
            p = e * pl.reciprocal(jnp.sum(e, axis=-1, keepdims=True), approx=True)
            oh = jnp.dot(p.astype(jnp.bfloat16), v_b,
                         preferred_element_type=jnp.float32)     # (H*N, d)
            outs.append(jnp.concatenate(
                [oh[h * seq_len:(h + 1) * seq_len, :] for h in range(heads)],
                axis=1))                                         # (N, H*d)
        out = jnp.concatenate(outs, axis=0) if nb > 1 else outs[0]   # (RT, H*d)

        y1 = (jnp.dot(out.astype(jnp.bfloat16), wo_ref[...],
                      preferred_element_type=jnp.float32)
              + bo_ref[...] + x)                                 # attn + residual (f32)

        o_ref[...] = y1.astype(o_ref.dtype)                      # cache y1 in output block
        xn2_scr[...] = _layernorm(y1, ln2g_ref[...], ln2b_ref[...]).astype(jnp.bfloat16)
        acc_scr[...] = jnp.zeros_like(acc_scr)

    # One GEGLU-FF inner-dim tile per grid step, accumulated in f32.
    xn2 = xn2_scr[...]
    a = jnp.dot(xn2, w1a_ref[...], preferred_element_type=jnp.float32) + b1a_ref[...]
    g = jnp.dot(xn2, w1g_ref[...], preferred_element_type=jnp.float32) + b1g_ref[...]
    act = (a * _gelu_exact(g)).astype(jnp.bfloat16)
    acc_scr[...] += jnp.dot(act, w2_ref[...], preferred_element_type=jnp.float32)

    @pl.when(t == pl.num_programs(1) - 1)
    def _finalize():
        o_ref[...] = (o_ref[...].astype(jnp.float32) + acc_scr[...]
                      + b2_ref[...]).astype(o_ref.dtype)


# ---------------------------------------------------------------------------
# Final LayerNorm + vocab-tiled logits kernel (LN computed once per row block)
# ---------------------------------------------------------------------------
def logits_kernel(x_ref, g_ref, b_ref, w_ref, bb_ref, o_ref, xn_scr):
    @pl.when(pl.program_id(1) == 0)
    def _layernorm_once():
        xn_scr[...] = _layernorm(x_ref[...].astype(jnp.float32),
                                 g_ref[...], b_ref[...]).astype(jnp.bfloat16)
    out = jnp.dot(xn_scr[...], w_ref[...],
                  preferred_element_type=jnp.float32) + bb_ref[...]
    o_ref[...] = out.astype(o_ref.dtype)


# ---------------------------------------------------------------------------
# Tile pickers
# ---------------------------------------------------------------------------
def _pick_tile(total, cap):
    """Largest multiple of 128 that divides `total` and is <= cap (else full)."""
    t = min(cap, total)
    t -= t % 128
    while t >= 128:
        if total % t == 0:
            return t
        t -= 128
    return total


def _pick_row_tile(rows, unit, cap=ROW_TILE_CAP):
    """Largest multiple of `unit` dividing `rows`, <= cap, sublane-legal."""
    max_m = max(1, min(rows // unit, cap // unit if cap >= unit else 1))
    for m in range(max_m, 0, -1):
        t = m * unit
        if rows % t == 0 and (t % 8 == 0 or t == rows):
            return t
    return rows


# ---------------------------------------------------------------------------
# pallas_call wrappers (activations are flat (B*N, D) bf16)
# ---------------------------------------------------------------------------
def transformer_layer(x2d, lp, bias, *, heads, dim_head, seq_len):
    R, D = x2d.shape
    inner = lp["w1a"].shape[1]
    ff_tile = _pick_tile(inner, FF_TILE_CAP)
    n_ff = inner // ff_tile
    row_tile = _pick_row_tile(R, seq_len)
    n_rows = R // row_tile

    def const(a):  # constant-index block: fetched once, single-buffered
        nd = a.ndim
        return pl.BlockSpec(a.shape, lambda g, t, _n=nd: (0,) * _n,
                            pipeline_mode=pl.Buffered(1))

    kern = functools.partial(transformer_layer_kernel, heads=heads,
                             dim_head=dim_head, seq_len=seq_len)
    return pl.pallas_call(
        kern,
        out_shape=jax.ShapeDtypeStruct((R, D), jnp.bfloat16),
        grid=(n_rows, n_ff),
        in_specs=[
            pl.BlockSpec((row_tile, D), lambda g, t: (g, 0)),
            const(lp["ln1_g"]), const(lp["ln1_b"]),
            const(lp["wq"]), const(lp["wkv"]), const(lp["wo"]), const(lp["bo"]),
            const(bias),
            const(lp["ln2_g"]), const(lp["ln2_b"]),
            pl.BlockSpec((D, ff_tile), lambda g, t: (0, t)),     # w1 (value half)
            pl.BlockSpec((1, ff_tile), lambda g, t: (0, t)),     # b1 (value half)
            pl.BlockSpec((D, ff_tile), lambda g, t: (0, t)),     # w1 (gate half)
            pl.BlockSpec((1, ff_tile), lambda g, t: (0, t)),     # b1 (gate half)
            pl.BlockSpec((ff_tile, D), lambda g, t: (t, 0)),     # w2
            const(lp["b2"]),
        ],
        out_specs=pl.BlockSpec((row_tile, D), lambda g, t: (g, 0)),
        scratch_shapes=[
            pltpu.VMEM((row_tile, D), jnp.bfloat16),   # LN2(y1), reused across FF tiles
            pltpu.VMEM((row_tile, D), jnp.float32),    # FF accumulator
        ],
        compiler_params=pltpu.CompilerParams(
            dimension_semantics=("parallel", "arbitrary"),
            vmem_limit_bytes=_vmem_limit_bytes()),
    )(x2d, lp["ln1_g"], lp["ln1_b"], lp["wq"], lp["wkv"], lp["wo"], lp["bo"], bias,
      lp["ln2_g"], lp["ln2_b"], lp["w1a"], lp["b1a"], lp["w1g"], lp["b1g"],
      lp["w2"], lp["b2"])


def logits_layer(x2d, params):
    R, D = x2d.shape
    V = params["w_logits"].shape[1]
    vt = _pick_tile(V, VOCAB_TILE_CAP)
    n_v = V // vt
    row_tile = _pick_row_tile(R, 8)
    n_rows = R // row_tile

    def const(a):
        nd = a.ndim
        return pl.BlockSpec(a.shape, lambda r, v, _n=nd: (0,) * _n,
                            pipeline_mode=pl.Buffered(1))

    return pl.pallas_call(
        logits_kernel,
        out_shape=jax.ShapeDtypeStruct((R, V), jnp.float32),
        grid=(n_rows, n_v),
        in_specs=[
            pl.BlockSpec((row_tile, D), lambda r, v: (r, 0)),
            const(params["final_ln_g"]), const(params["final_ln_b"]),
            pl.BlockSpec((D, vt), lambda r, v: (0, v)),
            pl.BlockSpec((1, vt), lambda r, v: (0, v)),
        ],
        out_specs=pl.BlockSpec((row_tile, vt), lambda r, v: (r, v)),
        scratch_shapes=[pltpu.VMEM((row_tile, D), jnp.bfloat16)],
        compiler_params=pltpu.CompilerParams(
            dimension_semantics=("parallel", "arbitrary"),
            vmem_limit_bytes=_vmem_limit_bytes()),
    )(x2d, params["final_ln_g"], params["final_ln_b"],
      params["w_logits"], params["b_logits"])


# ---------------------------------------------------------------------------
# T5 relative position bias (faithful to the reference, incl. its double-log),
# with the sqrt(dim_head) scale AND the causal mask folded in; stored in bf16.
# ---------------------------------------------------------------------------
def t5_relative_bias(rel_emb, n, *, num_buckets=32, max_distance=128, scale=1.0):
    q_pos = jnp.arange(n)
    k_pos = jnp.arange(n)
    rel_pos = k_pos[None, :] - q_pos[:, None]                  # (n, n)
    neg = jnp.maximum(-rel_pos, 0)
    max_exact = num_buckets // 2
    is_small = neg < max_exact
    val_if_large = max_exact + jnp.log(
        jnp.log(neg.astype(jnp.float32) / max_exact)
        / math.log(max_distance / max_exact)
        * (num_buckets - max_exact))
    val_if_large = jnp.minimum(val_if_large, float(num_buckets - 1))
    bucket = jnp.where(is_small, neg.astype(jnp.float32), val_if_large)
    bucket = jnp.clip(bucket.astype(jnp.int32), 0, num_buckets - 1)
    values = rel_emb[bucket]                                   # (n, n, heads)
    heads = rel_emb.shape[1]
    bias = jnp.transpose(values, (2, 0, 1)) * scale            # (heads, n, n)
    causal = jnp.where(rel_pos > 0, NEG_BIG, 0.0)              # triu(1) mask folded in
    bias = bias + causal[None, :, :]
    # TODO(synk): at large N, generate the bias inside the kernel from the shared
    # (N, N) bucket map and tile attention flash-style over the kv axis instead
    # of materializing heads*N^2 values in HBM per layer.
    return bias.reshape(heads * n, n).astype(jnp.bfloat16)     # rows grouped by head


# ---------------------------------------------------------------------------
# Parameter init (deterministic, synthetic; matmul weights stored in bf16;
# the dim_head**-0.5 attention scale is folded into wq).
# ---------------------------------------------------------------------------
def init_lamda_params(key, *, num_tokens, dim, depth, heads, dim_head,
                      ff_mult=4, num_buckets=32):
    inner_q = heads * dim_head
    ff_inner = dim * ff_mult
    keys = iter(jax.random.split(key, 4 + depth * 8))

    def nrm_f32(shape, std=0.02):
        return std * jax.random.normal(next(keys), shape, dtype=jnp.float32)

    params = {
        "token_emb": nrm_f32((num_tokens, dim), 1.0),
        "final_ln_g": jnp.ones((1, dim), jnp.float32),
        "final_ln_b": jnp.zeros((1, dim), jnp.float32),
        "w_logits": nrm_f32((dim, num_tokens)).astype(jnp.bfloat16),
        "b_logits": jnp.zeros((1, num_tokens), jnp.float32),
        "layers": [],
    }
    for _ in range(depth):
        lp = {
            "ln1_g": jnp.ones((1, dim), jnp.float32),
            "ln1_b": jnp.zeros((1, dim), jnp.float32),
            "wq": (nrm_f32((dim, inner_q)) * dim_head ** -0.5).astype(jnp.bfloat16),
            "wkv": nrm_f32((dim, 2 * dim_head)).astype(jnp.bfloat16),
            "wo": nrm_f32((inner_q, dim)).astype(jnp.bfloat16),
            "bo": jnp.zeros((1, dim), jnp.float32),
            "rel_emb": nrm_f32((num_buckets, heads)),
            "ln2_g": jnp.ones((1, dim), jnp.float32),
            "ln2_b": jnp.zeros((1, dim), jnp.float32),
            # w1 of the reference split into value / gate halves (GEGLU chunk).
            "w1a": nrm_f32((dim, ff_inner)).astype(jnp.bfloat16),
            "b1a": jnp.zeros((1, ff_inner), jnp.float32),
            "w1g": nrm_f32((dim, ff_inner)).astype(jnp.bfloat16),
            "b1g": jnp.zeros((1, ff_inner), jnp.float32),
            "w2": nrm_f32((ff_inner, dim)).astype(jnp.bfloat16),
            "b2": jnp.zeros((1, dim), jnp.float32),
        }
        params["layers"].append(lp)
    return params


# ---------------------------------------------------------------------------
# Full forward: (B, N) tokens -> (B, N, V) logits
# ---------------------------------------------------------------------------
def lamda_forward(params, tokens, *, heads, dim_head):
    B, N = tokens.shape
    # Embedding gather (glue); fold batch into the row dim and keep the
    # residual stream in bf16 between layer kernels.
    x = jnp.take(params["token_emb"], tokens.reshape(-1), axis=0)       # (B*N, D)
    x = x.astype(jnp.bfloat16)
    for lp in params["layers"]:
        bias = t5_relative_bias(lp["rel_emb"], N, scale=dim_head ** 0.5)
        x = transformer_layer(x, lp, bias, heads=heads, dim_head=dim_head,
                              seq_len=N)
    logits2d = logits_layer(x, params)                                  # (B*N, V) f32
    V = params["w_logits"].shape[1]
    return logits2d.reshape(B, N, V)


# ---------------------------------------------------------------------------
if __name__ == "__main__":
    NUM_TOKENS = 512
    DIM = 128
    DEPTH = 2
    HEADS = 2
    DIM_HEAD = 64
    BATCH = 2
    SEQ = 16

    key = jax.random.PRNGKey(0)
    pkey, tkey = jax.random.split(key)
    params = init_lamda_params(pkey, num_tokens=NUM_TOKENS, dim=DIM, depth=DEPTH,
                               heads=HEADS, dim_head=DIM_HEAD)
    tokens = jax.random.randint(tkey, (BATCH, SEQ), 0, NUM_TOKENS, dtype=jnp.int32)

    logits = lamda_forward(params, tokens, heads=HEADS, dim_head=DIM_HEAD)
    logits = jax.block_until_ready(logits)
    assert logits.shape == (BATCH, SEQ, NUM_TOKENS)
    assert bool(jnp.all(jnp.isfinite(logits)))
    print("KERNEL_OK")
</pallas_src>

<mosaic_0001>
module attributes {stable_mosaic.version = 11 : i64} {
  func.func @transformer_layer_kernel(%arg0: i32, %arg1: i32, %arg2: memref<32x128xbf16, #tpu.memory_space<vmem>>, %arg3: memref<1x128xf32, #tpu.memory_space<vmem>>, %arg4: memref<1x128xf32, #tpu.memory_space<vmem>>, %arg5: memref<128x128xbf16, #tpu.memory_space<vmem>>, %arg6: memref<128x128xbf16, #tpu.memory_space<vmem>>, %arg7: memref<128x128xbf16, #tpu.memory_space<vmem>>, %arg8: memref<1x128xf32, #tpu.memory_space<vmem>>, %arg9: memref<32x16xbf16, #tpu.memory_space<vmem>>, %arg10: memref<1x128xf32, #tpu.memory_space<vmem>>, %arg11: memref<1x128xf32, #tpu.memory_space<vmem>>, %arg12: memref<128x512xbf16, #tpu.memory_space<vmem>>, %arg13: memref<1x512xf32, #tpu.memory_space<vmem>>, %arg14: memref<128x512xbf16, #tpu.memory_space<vmem>>, %arg15: memref<1x512xf32, #tpu.memory_space<vmem>>, %arg16: memref<512x128xbf16, #tpu.memory_space<vmem>>, %arg17: memref<1x128xf32, #tpu.memory_space<vmem>>, %arg18: memref<32x128xbf16, #tpu.memory_space<vmem>>, %arg19: memref<32x128xbf16, #tpu.memory_space<vmem>>, %arg20: memref<32x128xf32, #tpu.memory_space<vmem>>) attributes {dimension_semantics = [#tpu.dimension_semantics<parallel>, #tpu.dimension_semantics<arbitrary>], iteration_bounds = array<i64: 1, 1>, scalar_prefetch = 0 : i64, scratch_operands = 2 : i64, tpu.core_type = #tpu.core_type<tc>, window_params = [{transform_indices = @transform_0, window_bounds = array<i64: 32, 128>}, {pipeline_mode = #tpu.pipeline_mode<synchronous>, transform_indices = @transform_1, window_bounds = array<i64: 1, 128>}, {pipeline_mode = #tpu.pipeline_mode<synchronous>, transform_indices = @transform_2, window_bounds = array<i64: 1, 128>}, {pipeline_mode = #tpu.pipeline_mode<synchronous>, transform_indices = @transform_3, window_bounds = array<i64: 128, 128>}, {pipeline_mode = #tpu.pipeline_mode<synchronous>, transform_indices = @transform_4, window_bounds = array<i64: 128, 128>}, {pipeline_mode = #tpu.pipeline_mode<synchronous>, transform_indices = @transform_5, window_bounds = array<i64: 128, 128>}, {pipeline_mode = #tpu.pipeline_mode<synchronous>, transform_indices = @transform_6, window_bounds = array<i64: 1, 128>}, {pipeline_mode = #tpu.pipeline_mode<synchronous>, transform_indices = @transform_7, window_bounds = array<i64: 32, 16>}, {pipeline_mode = #tpu.pipeline_mode<synchronous>, transform_indices = @transform_8, window_bounds = array<i64: 1, 128>}, {pipeline_mode = #tpu.pipeline_mode<synchronous>, transform_indices = @transform_9, window_bounds = array<i64: 1, 128>}, {transform_indices = @transform_10, window_bounds = array<i64: 128, 512>}, {transform_indices = @transform_11, window_bounds = array<i64: 1, 512>}, {transform_indices = @transform_12, window_bounds = array<i64: 128, 512>}, {transform_indices = @transform_13, window_bounds = array<i64: 1, 512>}, {transform_indices = @transform_14, window_bounds = array<i64: 512, 128>}, {pipeline_mode = #tpu.pipeline_mode<synchronous>, transform_indices = @transform_15, window_bounds = array<i64: 1, 128>}, {transform_indices = @transform_16, window_bounds = array<i64: 32, 128>}]} {
    %c0_i32 = arith.constant 0 : i32
    %0 = arith.cmpi eq, %arg1, %c0_i32 : i32
    %1 = arith.extui %0 : i1 to i32
    %c0_i32_0 = arith.constant 0 : i32
    %2 = arith.cmpi ne, %1, %c0_i32_0 : i32
    scf.if %2 {
      %c0_23 = arith.constant 0 : index
      %c0_24 = arith.constant 0 : index
      %32 = vector.load %arg2[%c0_23, %c0_24] : memref<32x128xbf16, #tpu.memory_space<vmem>>, vector<32x128xbf16>
      %33 = arith.extf %32 : vector<32x128xbf16> to vector<32x128xf32>
      %c0_25 = arith.constant 0 : index
      %c0_26 = arith.constant 0 : index
      %34 = vector.load %arg3[%c0_25, %c0_26] : memref<1x128xf32, #tpu.memory_space<vmem>>, vector<1x128xf32>
      %c0_27 = arith.constant 0 : index
      %c0_28 = arith.constant 0 : index
      %35 = vector.load %arg4[%c0_27, %c0_28] : memref<1x128xf32, #tpu.memory_space<vmem>>, vector<1x128xf32>
      %cst_29 = arith.constant dense<0.000000e+00> : vector<32xf32>
      %36 = vector.multi_reduction <add>, %33, %cst_29 [1] : vector<32x128xf32> to vector<32xf32>
      %37 = vector.shape_cast %36 : vector<32xf32> to vector<32x1xf32>
      %cst_30 = arith.constant 1.280000e+02 : f32
      %38 = vector.broadcast %cst_30 : f32 to vector<32x1xf32>
      %39 = arith.divf %37, %38 : vector<32x1xf32>
      %40 = vector.broadcast %39 : vector<32x1xf32> to vector<32x128xf32>
      %41 = arith.subf %33, %40 : vector<32x128xf32>
      %42 = arith.mulf %41, %41 : vector<32x128xf32>
      %cst_31 = arith.constant dense<0.000000e+00> : vector<32xf32>
      %43 = vector.multi_reduction <add>, %42, %cst_31 [1] : vector<32x128xf32> to vector<32xf32>
      %44 = vector.shape_cast %43 : vector<32xf32> to vector<32x1xf32>
      %cst_32 = arith.constant 1.280000e+02 : f32
      %45 = vector.broadcast %cst_32 : f32 to vector<32x1xf32>
      %46 = arith.divf %44, %45 : vector<32x1xf32>
      %47 = vector.broadcast %39 : vector<32x1xf32> to vector<32x128xf32>
      %48 = arith.subf %33, %47 : vector<32x128xf32>
      %cst_33 = arith.constant 9.99999974E-6 : f32
      %49 = vector.broadcast %cst_33 : f32 to vector<32x1xf32>
      %50 = arith.addf %46, %49 : vector<32x1xf32>
      %51 = math.rsqrt %50 : vector<32x1xf32>
      %52 = vector.broadcast %51 : vector<32x1xf32> to vector<32x128xf32>
      %53 = arith.mulf %48, %52 : vector<32x128xf32>
      %54 = vector.broadcast %34 : vector<1x128xf32> to vector<32x128xf32>
      %55 = arith.mulf %53, %54 : vector<32x128xf32>
      %56 = vector.broadcast %35 : vector<1x128xf32> to vector<32x128xf32>
      %57 = arith.addf %55, %56 : vector<32x128xf32>
      %58 = arith.truncf %57 : vector<32x128xf32> to vector<32x128xbf16>
      %c0_34 = arith.constant 0 : index
      %c0_35 = arith.constant 0 : index
      %59 = vector.load %arg5[%c0_34, %c0_35] : memref<128x128xbf16, #tpu.memory_space<vmem>>, vector<128x128xbf16>
      %cst_36 = arith.constant dense<0.000000e+00> : vector<32x128xf32>
      %60 = tpu.matmul %58, %59, %cst_36 {dimension_numbers = #tpu.dot_dimension_numbers<[1], [0], [0], [1], [0, 0, 1, 1], [], []>} : vector<32x128xbf16>, vector<128x128xbf16>, vector<32x128xf32> -> vector<32x128xf32>
      %c0_37 = arith.constant 0 : index
      %c0_38 = arith.constant 0 : index
      %61 = vector.load %arg6[%c0_37, %c0_38] : memref<128x128xbf16, #tpu.memory_space<vmem>>, vector<128x128xbf16>
      %cst_39 = arith.constant dense<0.000000e+00> : vector<32x128xf32>
      %62 = tpu.matmul %58, %61, %cst_39 {dimension_numbers = #tpu.dot_dimension_numbers<[1], [0], [0], [1], [0, 0, 1, 1], [], []>} : vector<32x128xbf16>, vector<128x128xbf16>, vector<32x128xf32> -> vector<32x128xf32>
      %63 = arith.truncf %60 : vector<32x128xf32> to vector<32x128xbf16>
      %64 = vector.extract_strided_slice %62 {offsets = [0, 0], sizes = [32, 64], strides = [1, 1]} : vector<32x128xf32> to vector<32x64xf32>
      %65 = arith.truncf %64 : vector<32x64xf32> to vector<32x64xbf16>
      %66 = vector.extract_strided_slice %62 {offsets = [0, 64], sizes = [32, 64], strides = [1, 1]} : vector<32x128xf32> to vector<32x64xf32>
      %67 = arith.truncf %66 : vector<32x64xf32> to vector<32x64xbf16>
      %c0_40 = arith.constant 0 : index
      %c0_41 = arith.constant 0 : index
      %68 = vector.load %arg9[%c0_40, %c0_41] : memref<32x16xbf16, #tpu.memory_space<vmem>>, vector<32x16xbf16>
      %69 = arith.extf %68 : vector<32x16xbf16> to vector<32x16xf32>
      %70 = vector.extract_strided_slice %63 {offsets = [0, 0], sizes = [16, 128], strides = [1, 1]} : vector<32x128xbf16> to vector<16x128xbf16>
      %71 = vector.extract_strided_slice %65 {offsets = [0, 0], sizes = [16, 64], strides = [1, 1]} : vector<32x64xbf16> to vector<16x64xbf16>
      %72 = vector.extract_strided_slice %67 {offsets = [0, 0], sizes = [16, 64], strides = [1, 1]} : vector<32x64xbf16> to vector<16x64xbf16>
      %73 = vector.extract_strided_slice %70 {offsets = [0, 0], sizes = [16, 64], strides = [1, 1]} : vector<16x128xbf16> to vector<16x64xbf16>
      %74 = vector.extract_strided_slice %70 {offsets = [0, 64], sizes = [16, 64], strides = [1, 1]} : vector<16x128xbf16> to vector<16x64xbf16>
      %75 = tpu.concatenate %73, %74 in 0 : vector<16x64xbf16>, vector<16x64xbf16> -> vector<32x64xbf16>
      %cst_42 = arith.constant dense<0.000000e+00> : vector<32x16xf32>
      %76 = tpu.matmul %75, %71, %cst_42 {dimension_numbers = #tpu.dot_dimension_numbers<[1], [1], [0], [0], [0, 0, 1, 0], [], []>} : vector<32x64xbf16>, vector<16x64xbf16>, vector<32x16xf32> -> vector<32x16xf32>
      %77 = arith.addf %76, %69 : vector<32x16xf32>
      %cst_43 = arith.constant dense<0xFF800000> : vector<32xf32>
      %78 = vector.multi_reduction <maximumf>, %77, %cst_43 [1] : vector<32x16xf32> to vector<32xf32>
      %79 = vector.shape_cast %78 : vector<32xf32> to vector<32x1xf32>
      %80 = vector.broadcast %79 : vector<32x1xf32> to vector<32x16xf32>
      %81 = arith.subf %77, %80 : vector<32x16xf32>
      %82 = math.exp %81 : vector<32x16xf32>
      %cst_44 = arith.constant dense<0.000000e+00> : vector<32xf32>
      %83 = vector.multi_reduction <add>, %82, %cst_44 [1] : vector<32x16xf32> to vector<32xf32>
      %84 = vector.shape_cast %83 : vector<32xf32> to vector<32x1xf32>
      %85 = tpu.reciprocal %84 {approx = true} : vector<32x1xf32> -> vector<32x1xf32>
      %86 = vector.broadcast %85 : vector<32x1xf32> to vector<32x16xf32>
      %87 = arith.mulf %82, %86 : vector<32x16xf32>
      %88 = arith.truncf %87 : vector<32x16xf32> to vector<32x16xbf16>
      %cst_45 = arith.constant dense<0.000000e+00> : vector<32x64xf32>
      %89 = tpu.matmul %88, %72, %cst_45 {dimension_numbers = #tpu.dot_dimension_numbers<[1], [0], [0], [1], [0, 0, 1, 1], [], []>} : vector<32x16xbf16>, vector<16x64xbf16>, vector<32x64xf32> -> vector<32x64xf32>
      %90 = vector.extract_strided_slice %89 {offsets = [0, 0], sizes = [16, 64], strides = [1, 1]} : vector<32x64xf32> to vector<16x64xf32>
      %91 = vector.extract_strided_slice %89 {offsets = [16, 0], sizes = [16, 64], strides = [1, 1]} : vector<32x64xf32> to vector<16x64xf32>
      %92 = tpu.concatenate %90, %91 in 1 : vector<16x64xf32>, vector<16x64xf32> -> vector<16x128xf32>
      %93 = vector.extract_strided_slice %63 {offsets = [16, 0], sizes = [16, 128], strides = [1, 1]} : vector<32x128xbf16> to vector<16x128xbf16>
      %94 = vector.extract_strided_slice %65 {offsets = [16, 0], sizes = [16, 64], strides = [1, 1]} : vector<32x64xbf16> to vector<16x64xbf16>
      %95 = vector.extract_strided_slice %67 {offsets = [16, 0], sizes = [16, 64], strides = [1, 1]} : vector<32x64xbf16> to vector<16x64xbf16>
      %96 = vector.extract_strided_slice %93 {offsets = [0, 0], sizes = [16, 64], strides = [1, 1]} : vector<16x128xbf16> to vector<16x64xbf16>
      %97 = vector.extract_strided_slice %93 {offsets = [0, 64], sizes = [16, 64], strides = [1, 1]} : vector<16x128xbf16> to vector<16x64xbf16>
      %98 = tpu.concatenate %96, %97 in 0 : vector<16x64xbf16>, vector<16x64xbf16> -> vector<32x64xbf16>
      %cst_46 = arith.constant dense<0.000000e+00> : vector<32x16xf32>
      %99 = tpu.matmul %98, %94, %cst_46 {dimension_numbers = #tpu.dot_dimension_numbers<[1], [1], [0], [0], [0, 0, 1, 0], [], []>} : vector<32x64xbf16>, vector<16x64xbf16>, vector<32x16xf32> -> vector<32x16xf32>
      %100 = arith.addf %99, %69 : vector<32x16xf32>
      %cst_47 = arith.constant dense<0xFF800000> : vector<32xf32>
      %101 = vector.multi_reduction <maximumf>, %100, %cst_47 [1] : vector<32x16xf32> to vector<32xf32>
      %102 = vector.shape_cast %101 : vector<32xf32> to vector<32x1xf32>
      %103 = vector.broadcast %102 : vector<32x1xf32> to vector<32x16xf32>
      %104 = arith.subf %100, %103 : vector<32x16xf32>
      %105 = math.exp %104 : vector<32x16xf32>
      %cst_48 = arith.constant dense<0.000000e+00> : vector<32xf32>
      %106 = vector.multi_reduction <add>, %105, %cst_48 [1] : vector<32x16xf32> to vector<32xf32>
      %107 = vector.shape_cast %106 : vector<32xf32> to vector<32x1xf32>
      %108 = tpu.reciprocal %107 {approx = true} : vector<32x1xf32> -> vector<32x1xf32>
      %109 = vector.broadcast %108 : vector<32x1xf32> to vector<32x16xf32>
      %110 = arith.mulf %105, %109 : vector<32x16xf32>
      %111 = arith.truncf %110 : vector<32x16xf32> to vector<32x16xbf16>
      %cst_49 = arith.constant dense<0.000000e+00> : vector<32x64xf32>
      %112 = tpu.matmul %111, %95, %cst_49 {dimension_numbers = #tpu.dot_dimension_numbers<[1], [0], [0], [1], [0, 0, 1, 1], [], []>} : vector<32x16xbf16>, vector<16x64xbf16>, vector<32x64xf32> -> vector<32x64xf32>
      %113 = vector.extract_strided_slice %112 {offsets = [0, 0], sizes = [16, 64], strides = [1, 1]} : vector<32x64xf32> to vector<16x64xf32>
      %114 = vector.extract_strided_slice %112 {offsets = [16, 0], sizes = [16, 64], strides = [1, 1]} : vector<32x64xf32> to vector<16x64xf32>
      %115 = tpu.concatenate %113, %114 in 1 : vector<16x64xf32>, vector<16x64xf32> -> vector<16x128xf32>
      %116 = tpu.concatenate %92, %115 in 0 : vector<16x128xf32>, vector<16x128xf32> -> vector<32x128xf32>
      %117 = arith.truncf %116 : vector<32x128xf32> to vector<32x128xbf16>
      %c0_50 = arith.constant 0 : index
      %c0_51 = arith.constant 0 : index
      %118 = vector.load %arg7[%c0_50, %c0_51] : memref<128x128xbf16, #tpu.memory_space<vmem>>, vector<128x128xbf16>
      %cst_52 = arith.constant dense<0.000000e+00> : vector<32x128xf32>
      %119 = tpu.matmul %117, %118, %cst_52 {dimension_numbers = #tpu.dot_dimension_numbers<[1], [0], [0], [1], [0, 0, 1, 1], [], []>} : vector<32x128xbf16>, vector<128x128xbf16>, vector<32x128xf32> -> vector<32x128xf32>
      %c0_53 = arith.constant 0 : index
      %c0_54 = arith.constant 0 : index
      %120 = vector.load %arg8[%c0_53, %c0_54] : memref<1x128xf32, #tpu.memory_space<vmem>>, vector<1x128xf32>
      %121 = vector.broadcast %120 : vector<1x128xf32> to vector<32x128xf32>
      %122 = arith.addf %119, %121 : vector<32x128xf32>
      %123 = arith.addf %122, %33 : vector<32x128xf32>
      %124 = arith.truncf %123 : vector<32x128xf32> to vector<32x128xbf16>
      %c0_55 = arith.constant 0 : index
      %c0_56 = arith.constant 0 : index
      %125 = vector.load %arg18[%c0_55, %c0_56] : memref<32x128xbf16, #tpu.memory_space<vmem>>, vector<32x128xbf16>
      tpu.vector_store %arg18[%c0_55, %c0_56], %124 {strides = array<i32>} : memref<32x128xbf16, #tpu.memory_space<vmem>>, vector<32x128xbf16>,
      %c0_57 = arith.constant 0 : index
      %c0_58 = arith.constant 0 : index
      %126 = vector.load %arg10[%c0_57, %c0_58] : memref<1x128xf32, #tpu.memory_space<vmem>>, vector<1x128xf32>
      %c0_59 = arith.constant 0 : index
      %c0_60 = arith.constant 0 : index
      %127 = vector.load %arg11[%c0_59, %c0_60] : memref<1x128xf32, #tpu.memory_space<vmem>>, vector<1x128xf32>
      %cst_61 = arith.constant dense<0.000000e+00> : vector<32xf32>
      %128 = vector.multi_reduction <add>, %123, %cst_61 [1] : vector<32x128xf32> to vector<32xf32>
      %129 = vector.shape_cast %128 : vector<32xf32> to vector<32x1xf32>
      %cst_62 = arith.constant 1.280000e+02 : f32
      %130 = vector.broadcast %cst_62 : f32 to vector<32x1xf32>
      %131 = arith.divf %129, %130 : vector<32x1xf32>
      %132 = vector.broadcast %131 : vector<32x1xf32> to vector<32x128xf32>
      %133 = arith.subf %123, %132 : vector<32x128xf32>
      %134 = arith.mulf %133, %133 : vector<32x128xf32>
      %cst_63 = arith.constant dense<0.000000e+00> : vector<32xf32>
      %135 = vector.multi_reduction <add>, %134, %cst_63 [1] : vector<32x128xf32> to vector<32xf32>
      %136 = vector.shape_cast %135 : vector<32xf32> to vector<32x1xf32>
      %cst_64 = arith.constant 1.280000e+02 : f32
      %137 = vector.broadcast %cst_64 : f32 to vector<32x1xf32>
      %138 = arith.divf %136, %137 : vector<32x1xf32>
      %139 = vector.broadcast %131 : vector<32x1xf32> to vector<32x128xf32>
      %140 = arith.subf %123, %139 : vector<32x128xf32>
      %cst_65 = arith.constant 9.99999974E-6 : f32
      %141 = vector.broadcast %cst_65 : f32 to vector<32x1xf32>
      %142 = arith.addf %138, %141 : vector<32x1xf32>
      %143 = math.rsqrt %142 : vector<32x1xf32>
      %144 = vector.broadcast %143 : vector<32x1xf32> to vector<32x128xf32>
      %145 = arith.mulf %140, %144 : vector<32x128xf32>
      %146 = vector.broadcast %126 : vector<1x128xf32> to vector<32x128xf32>
      %147 = arith.mulf %145, %146 : vector<32x128xf32>
      %148 = vector.broadcast %127 : vector<1x128xf32> to vector<32x128xf32>
      %149 = arith.addf %147, %148 : vector<32x128xf32>
      %150 = arith.truncf %149 : vector<32x128xf32> to vector<32x128xbf16>
      %c0_66 = arith.constant 0 : index
      %c0_67 = arith.constant 0 : index
      %151 = vector.load %arg19[%c0_66, %c0_67] : memref<32x128xbf16, #tpu.memory_space<vmem>>, vector<32x128xbf16>
      tpu.vector_store %arg19[%c0_66, %c0_67], %150 {strides = array<i32>} : memref<32x128xbf16, #tpu.memory_space<vmem>>, vector<32x128xbf16>,
      %cst_68 = arith.constant 0.000000e+00 : f32
      %152 = vector.broadcast %cst_68 : f32 to vector<32x128xf32>
      %c0_69 = arith.constant 0 : index
      %c0_70 = arith.constant 0 : index
      %153 = vector.load %arg20[%c0_69, %c0_70] : memref<32x128xf32, #tpu.memory_space<vmem>>, vector<32x128xf32>
      tpu.vector_store %arg20[%c0_69, %c0_70], %152 {strides = array<i32>} : memref<32x128xf32, #tpu.memory_space<vmem>>, vector<32x128xf32>,
    } else {
    }
    %c0 = arith.constant 0 : index
    %c0_1 = arith.constant 0 : index
    %3 = vector.load %arg19[%c0, %c0_1] : memref<32x128xbf16, #tpu.memory_space<vmem>>, vector<32x128xbf16>
    %c0_2 = arith.constant 0 : index
    %c0_3 = arith.constant 0 : index
    %4 = vector.load %arg12[%c0_2, %c0_3] : memref<128x512xbf16, #tpu.memory_space<vmem>>, vector<128x512xbf16>
    %cst = arith.constant dense<0.000000e+00> : vector<32x512xf32>
    %5 = tpu.matmul %3, %4, %cst {dimension_numbers = #tpu.dot_dimension_numbers<[1], [0], [0], [1], [0, 0, 1, 1], [], []>} : vector<32x128xbf16>, vector<128x512xbf16>, vector<32x512xf32> -> vector<32x512xf32>
    %c0_4 = arith.constant 0 : index
    %c0_5 = arith.constant 0 : index
    %6 = vector.load %arg13[%c0_4, %c0_5] : memref<1x512xf32, #tpu.memory_space<vmem>>, vector<1x512xf32>
    %7 = vector.broadcast %6 : vector<1x512xf32> to vector<32x512xf32>
    %8 = arith.addf %5, %7 : vector<32x512xf32>
    %c0_6 = arith.constant 0 : index
    %c0_7 = arith.constant 0 : index
    %9 = vector.load %arg14[%c0_6, %c0_7] : memref<128x512xbf16, #tpu.memory_space<vmem>>, vector<128x512xbf16>
    %cst_8 = arith.constant dense<0.000000e+00> : vector<32x512xf32>
    %10 = tpu.matmul %3, %9, %cst_8 {dimension_numbers = #tpu.dot_dimension_numbers<[1], [0], [0], [1], [0, 0, 1, 1], [], []>} : vector<32x128xbf16>, vector<128x512xbf16>, vector<32x512xf32> -> vector<32x512xf32>
    %c0_9 = arith.constant 0 : index
    %c0_10 = arith.constant 0 : index
    %11 = vector.load %arg15[%c0_9, %c0_10] : memref<1x512xf32, #tpu.memory_space<vmem>>, vector<1x512xf32>
    %12 = vector.broadcast %11 : vector<1x512xf32> to vector<32x512xf32>
    %13 = arith.addf %10, %12 : vector<32x512xf32>
    %cst_11 = arith.constant 5.000000e-01 : f32
    %14 = vector.broadcast %cst_11 : f32 to vector<32x512xf32>
    %15 = arith.mulf %14, %13 : vector<32x512xf32>
    %cst_12 = arith.constant 0.707106769 : f32
    %16 = vector.broadcast %cst_12 : f32 to vector<32x512xf32>
    %17 = arith.mulf %13, %16 : vector<32x512xf32>
    %18 = math.erf %17 : vector<32x512xf32>
    %cst_13 = arith.constant 1.000000e+00 : f32
    %19 = vector.broadcast %cst_13 : f32 to vector<32x512xf32>
    %20 = arith.addf %19, %18 : vector<32x512xf32>
    %21 = arith.mulf %15, %20 : vector<32x512xf32>
    %22 = arith.mulf %8, %21 : vector<32x512xf32>
    %23 = arith.truncf %22 : vector<32x512xf32> to vector<32x512xbf16>
    %c0_14 = arith.constant 0 : index
    %c0_15 = arith.constant 0 : index
    %24 = vector.load %arg20[%c0_14, %c0_15] : memref<32x128xf32, #tpu.memory_space<vmem>>, vector<32x128xf32>
    %c0_16 = arith.constant 0 : index
    %c0_17 = arith.constant 0 : index
    %25 = vector.load %arg16[%c0_16, %c0_17] : memref<512x128xbf16, #tpu.memory_space<vmem>>, vector<512x128xbf16>
    %cst_18 = arith.constant dense<0.000000e+00> : vector<32x128xf32>
    %26 = tpu.matmul %23, %25, %cst_18 {dimension_numbers = #tpu.dot_dimension_numbers<[1], [0], [0], [1], [0, 0, 1, 1], [], []>} : vector<32x512xbf16>, vector<512x128xbf16>, vector<32x128xf32> -> vector<32x128xf32>
    %27 = arith.addf %24, %26 : vector<32x128xf32>
    %c0_19 = arith.constant 0 : index
    %c0_20 = arith.constant 0 : index
    %28 = vector.load %arg20[%c0_19, %c0_20] : memref<32x128xf32, #tpu.memory_space<vmem>>, vector<32x128xf32>
    tpu.vector_store %arg20[%c0_19, %c0_20], %27 {strides = array<i32>} : memref<32x128xf32, #tpu.memory_space<vmem>>, vector<32x128xf32>,
    %c0_i32_21 = arith.constant 0 : i32
    %29 = arith.cmpi eq, %arg1, %c0_i32_21 : i32
    %30 = arith.extui %29 : i1 to i32
    %c0_i32_22 = arith.constant 0 : i32
    %31 = arith.cmpi ne, %30, %c0_i32_22 : i32
    scf.if %31 {
      %c0_23 = arith.constant 0 : index
      %c0_24 = arith.constant 0 : index
      %32 = vector.load %arg18[%c0_23, %c0_24] : memref<32x128xbf16, #tpu.memory_space<vmem>>, vector<32x128xbf16>
      %33 = arith.extf %32 : vector<32x128xbf16> to vector<32x128xf32>
      %c0_25 = arith.constant 0 : index
      %c0_26 = arith.constant 0 : index
      %34 = vector.load %arg20[%c0_25, %c0_26] : memref<32x128xf32, #tpu.memory_space<vmem>>, vector<32x128xf32>
      %35 = arith.addf %33, %34 : vector<32x128xf32>
      %c0_27 = arith.constant 0 : index
      %c0_28 = arith.constant 0 : index
      %36 = vector.load %arg17[%c0_27, %c0_28] : memref<1x128xf32, #tpu.memory_space<vmem>>, vector<1x128xf32>
      %37 = vector.broadcast %36 : vector<1x128xf32> to vector<32x128xf32>
      %38 = arith.addf %35, %37 : vector<32x128xf32>
      %39 = arith.truncf %38 : vector<32x128xf32> to vector<32x128xbf16>
      %c0_29 = arith.constant 0 : index
      %c0_30 = arith.constant 0 : index
      %40 = vector.load %arg18[%c0_29, %c0_30] : memref<32x128xbf16, #tpu.memory_space<vmem>>, vector<32x128xbf16>
      tpu.vector_store %arg18[%c0_29, %c0_30], %39 {strides = array<i32>} : memref<32x128xbf16, #tpu.memory_space<vmem>>, vector<32x128xbf16>,
    } else {
    }
    return
  }
  func.func @transform_0(%arg0: i32, %arg1: i32) -> (i32, i32) {
    %c0_i32 = arith.constant 0 : i32
    %c0_i32_0 = arith.constant 0 : i32
    return %arg0, %c0_i32 : i32, i32
  }
  func.func @transform_1(%arg0: i32, %arg1: i32) -> (i32, i32) {
    %c0_i32 = arith.constant 0 : i32
    %c0_i32_0 = arith.constant 0 : i32
    %c0_i32_1 = arith.constant 0 : i32
    return %c0_i32, %c0_i32_0 : i32, i32
  }
  func.func @transform_2(%arg0: i32, %arg1: i32) -> (i32, i32) {
    %c0_i32 = arith.constant 0 : i32
    %c0_i32_0 = arith.constant 0 : i32
    %c0_i32_1 = arith.constant 0 : i32
    return %c0_i32, %c0_i32_0 : i32, i32
  }
  func.func @transform_3(%arg0: i32, %arg1: i32) -> (i32, i32) {
    %c0_i32 = arith.constant 0 : i32
    %c0_i32_0 = arith.constant 0 : i32
    %c0_i32_1 = arith.constant 0 : i32
    return %c0_i32, %c0_i32_0 : i32, i32
  }
  func.func @transform_4(%arg0: i32, %arg1: i32) -> (i32, i32) {
    %c0_i32 = arith.constant 0 : i32
    %c0_i32_0 = arith.constant 0 : i32
    %c0_i32_1 = arith.constant 0 : i32
    return %c0_i32, %c0_i32_0 : i32, i32
  }
  func.func @transform_5(%arg0: i32, %arg1: i32) -> (i32, i32) {
    %c0_i32 = arith.constant 0 : i32
    %c0_i32_0 = arith.constant 0 : i32
    %c0_i32_1 = arith.constant 0 : i32
    return %c0_i32, %c0_i32_0 : i32, i32
  }
  func.func @transform_6(%arg0: i32, %arg1: i32) -> (i32, i32) {
    %c0_i32 = arith.constant 0 : i32
    %c0_i32_0 = arith.constant 0 : i32
    %c0_i32_1 = arith.constant 0 : i32
    return %c0_i32, %c0_i32_0 : i32, i32
  }
  func.func @transform_7(%arg0: i32, %arg1: i32) -> (i32, i32) {
    %c0_i32 = arith.constant 0 : i32
    %c0_i32_0 = arith.constant 0 : i32
    %c0_i32_1 = arith.constant 0 : i32
    return %c0_i32, %c0_i32_0 : i32, i32
  }
  func.func @transform_8(%arg0: i32, %arg1: i32) -> (i32, i32) {
    %c0_i32 = arith.constant 0 : i32
    %c0_i32_0 = arith.constant 0 : i32
    %c0_i32_1 = arith.constant 0 : i32
    return %c0_i32, %c0_i32_0 : i32, i32
  }
  func.func @transform_9(%arg0: i32, %arg1: i32) -> (i32, i32) {
    %c0_i32 = arith.constant 0 : i32
    %c0_i32_0 = arith.constant 0 : i32
    %c0_i32_1 = arith.constant 0 : i32
    return %c0_i32, %c0_i32_0 : i32, i32
  }
  func.func @transform_10(%arg0: i32, %arg1: i32) -> (i32, i32) {
    %c0_i32 = arith.constant 0 : i32
    %c0_i32_0 = arith.constant 0 : i32
    return %c0_i32, %arg1 : i32, i32
  }
  func.func @transform_11(%arg0: i32, %arg1: i32) -> (i32, i32) {
    %c0_i32 = arith.constant 0 : i32
    %c0_i32_0 = arith.constant 0 : i32
    return %c0_i32, %arg1 : i32, i32
  }
  func.func @transform_12(%arg0: i32, %arg1: i32) -> (i32, i32) {
    %c0_i32 = arith.constant 0 : i32
    %c0_i32_0 = arith.constant 0 : i32
    return %c0_i32, %arg1 : i32, i32
  }
  func.func @transform_13(%arg0: i32, %arg1: i32) -> (i32, i32) {
    %c0_i32 = arith.constant 0 : i32
    %c0_i32_0 = arith.constant 0 : i32
    return %c0_i32, %arg1 : i32, i32
  }
  func.func @transform_14(%arg0: i32, %arg1: i32) -> (i32, i32) {
    %c0_i32 = arith.constant 0 : i32
    %c0_i32_0 = arith.constant 0 : i32
    return %arg1, %c0_i32 : i32, i32
  }
  func.func @transform_15(%arg0: i32, %arg1: i32) -> (i32, i32) {
    %c0_i32 = arith.constant 0 : i32
    %c0_i32_0 = arith.constant 0 : i32
    %c0_i32_1 = arith.constant 0 : i32
    return %c0_i32, %c0_i32_0 : i32, i32
  }
  func.func @transform_16(%arg0: i32, %arg1: i32) -> (i32, i32) {
    %c0_i32 = arith.constant 0 : i32
    %c0_i32_0 = arith.constant 0 : i32
    return %arg0, %c0_i32 : i32, i32
  }
}

</mosaic_0001>

<llo_original>
// kernel: tpu_custom_call.1
$region0: #{tpu_custom_call.1}
  #allocation0 [shape = 'u32[]', space=smem, size = 0x4, offset = 0x4, fixed_abs, tag = 'smem constant byte address 0x4 - core index']
  #allocation1 [shape = 'u32[144,128]{1,0:T(1,128)}', space=vmem, size = 0x12000, scoped, tag = 'internal scratch']
  #allocation2 [shape = 'bf16[32,128]{1,0:T(16,128)(2,1)}', space=vmem, size = 0x2000, scoped, tag = 'scratch operand']
  #allocation3 [shape = 'f32[32,128]{1,0:T(8,128)}', space=vmem, size = 0x4000, scoped, tag = 'scratch operand']
  %s0 = inlined_call_operand.vmem [shape: bf16[32,128], index: 0, kind: input, shape index: {}]
  %s1 = inlined_call_operand.vmem [shape: f32[1,128], index: 1, kind: input, shape index: {}]
  %s2 = inlined_call_operand.vmem [shape: f32[1,128], index: 2, kind: input, shape index: {}]
  %s3 = inlined_call_operand.hbm [shape: bf16[128,128], index: 3, kind: input, shape index: {}]
  %s4 = inlined_call_operand.hbm [shape: bf16[128,128], index: 4, kind: input, shape index: {}]
  %s5 = inlined_call_operand.hbm [shape: bf16[128,128], index: 5, kind: input, shape index: {}]
  %s6 = inlined_call_operand.vmem [shape: f32[1,128], index: 6, kind: input, shape index: {}]
  %s7 = inlined_call_operand.vmem [shape: bf16[32,16], index: 7, kind: input, shape index: {}]
  %s8 = inlined_call_operand.vmem [shape: f32[1,128], index: 8, kind: input, shape index: {}]
  %s9 = inlined_call_operand.vmem [shape: f32[1,128], index: 9, kind: input, shape index: {}]
  %s10 = inlined_call_operand.hbm [shape: bf16[128,512], index: 10, kind: input, shape index: {}]
  %s11 = inlined_call_operand.vmem [shape: f32[1,512], index: 11, kind: input, shape index: {}]
  %s12 = inlined_call_operand.hbm [shape: bf16[128,512], index: 12, kind: input, shape index: {}]
  %s13 = inlined_call_operand.vmem [shape: f32[1,512], index: 13, kind: input, shape index: {}]
  %s14 = inlined_call_operand.hbm [shape: bf16[512,128], index: 14, kind: input, shape index: {}]
  %s15 = inlined_call_operand.vmem [shape: f32[1,128], index: 15, kind: input, shape index: {}]
  %s16 = inlined_call_operand.hbm [shape: bf16[32,128], index: 16, kind: output, shape index: {}]
  %s17 = sld [smem:[#allocation0]]
  $region106: #{tpu_custom_call.1} parent=0
    _
  %s19 = ssub.s32 1, %s17
  %s20 = scalar_select 0, %s19, %s17
  $region1: #{tpu_custom_call.1} parent=0
    #allocation4 [shape = 'u8[32768]{0}', space=vmem, size = 0x8000, scoped, tag = 'input window, operand 3, single buffered']
    #allocation5 [shape = 's32[1]{0}', space=sflag, size = 0x4, scoped, tag = 'scoped memory for tpu_custom_call.1']
    #allocation6 [shape = 's32[1]{0}', space=sflag, size = 0x4, scoped, tag = 'scoped memory for tpu_custom_call.1']
    #allocation7 [shape = 'u8[32768]{0}', space=vmem, size = 0x8000, scoped, tag = 'input window, operand 4, single buffered']
    #allocation8 [shape = 's32[1]{0}', space=sflag, size = 0x4, scoped, tag = 'scoped memory for tpu_custom_call.1']
    #allocation9 [shape = 'u8[32768]{0}', space=vmem, size = 0x8000, scoped, tag = 'input window, operand 5, single buffered']
    #allocation10 [shape = 'u8[131072]{0}', space=vmem, size = 0x20000, scoped, tag = 'input window, operand 10, single buffered']
    #allocation11 [shape = 's32[1]{0}', space=sflag, size = 0x4, scoped, tag = 'scoped memory for tpu_custom_call.1']
    #allocation12 [shape = 'u8[131072]{0}', space=vmem, size = 0x20000, scoped, tag = 'input window, operand 12, single buffered']
    #allocation13 [shape = 'u8[131072]{0}', space=vmem, size = 0x20000, scoped, tag = 'input window, operand 14, single buffered']
    #allocation14 [shape = 's32[1]{0}', space=sflag, size = 0x4, scoped, tag = 'scoped memory for tpu_custom_call.1']
    #allocation15 [shape = 'u8[8192]{0}', space=vmem, size = 0x2000, scoped, tag = 'output window, operand 0, single buffered']
    %21 = vsyncpa [#allocation5], 0
    %22 = vsyncpa [#allocation8], 0
    %23 = vsyncpa [#allocation11], 0
    %24 = vsyncpa [#allocation14], 0
    %25 = vsyncpa [#allocation6], 0
    // Predicated region
    $region2: #{tpu_custom_call.1} parent=1 // pred_check
      _
    $region3: #{tpu_custom_call.1} parent=1 // pred_check_branch
      %27 = sbr.rel (0) target = $region5
    $region4: #{tpu_custom_call.1} parent=1 // pred_region
      _
    $region5: #{tpu_custom_call.1} parent=1 // pred_fallthru
      _
    // Predicated region
    $region6: #{tpu_custom_call.1} parent=1 // pred_check
      _
    $region7: #{tpu_custom_call.1} parent=1 // pred_check_branch
      %29 = sbr.rel (0) target = $region9
    $region8: #{tpu_custom_call.1} parent=1 // pred_region
      _
    $region9: #{tpu_custom_call.1} parent=1 // pred_fallthru
      _
    // Predicated region
    $region10: #{tpu_custom_call.1} parent=1 // pred_check
      _
    $region11: #{tpu_custom_call.1} parent=1 // pred_check_branch
      %31 = sbr.rel (0) target = $region13
    $region12: #{tpu_custom_call.1} parent=1 // pred_region
      _
    $region13: #{tpu_custom_call.1} parent=1 // pred_fallthru
      _
    // Predicated region
    $region14: #{tpu_custom_call.1} parent=1 // pred_check
      _
    $region15: #{tpu_custom_call.1} parent=1 // pred_check_branch
      %33 = sbr.rel (0) target = $region17
    $region16: #{tpu_custom_call.1} parent=1 // pred_region
      %s35 = ssub.s32 1024, 1024
      %36 = vsyncadd [#allocation5], %s35
      %s37 = sshll.u32 [#allocation4], 4
      %s38 = int_to_ptr.vmem [resolvable:$true] %s37
      %43 = dma.hbm_to_vmem [thread:$0]  %s3, 1024, %s38, [#allocation5], 64, 64, 4
    $region17: #{tpu_custom_call.1} parent=1 // pred_fallthru
      _
    // Predicated region
    $region18: #{tpu_custom_call.1} parent=1 // pred_check
      _
    $region19: #{tpu_custom_call.1} parent=1 // pred_check_branch
      %45 = sbr.rel (0) target = $region21
    $region20: #{tpu_custom_call.1} parent=1 // pred_region
      %s47 = ssub.s32 1024, 1024
      %48 = vsyncadd [#allocation8], %s47
      %s49 = sshll.u32 [#allocation7], 4
      %s50 = int_to_ptr.vmem [resolvable:$true] %s49
      %55 = dma.hbm_to_vmem [thread:$0]  %s4, 1024, %s50, [#allocation8], 64, 64, 4
    $region21: #{tpu_custom_call.1} parent=1 // pred_fallthru
      _
    // Predicated region
    $region22: #{tpu_custom_call.1} parent=1 // pred_check
      _
    $region23: #{tpu_custom_call.1} parent=1 // pred_check_branch
      %57 = sbr.rel (0) target = $region25
    $region24: #{tpu_custom_call.1} parent=1 // pred_region
      %s59 = ssub.s32 1024, 1024
      %60 = vsyncadd [#allocation8], %s59
      %s61 = sshll.u32 [#allocation9], 4
      %s62 = int_to_ptr.vmem [resolvable:$true] %s61
      %67 = dma.hbm_to_vmem [thread:$0]  %s5, 1024, %s62, [#allocation8], 64, 64, 4
    $region25: #{tpu_custom_call.1} parent=1 // pred_fallthru
      _
    // Predicated region
    $region26: #{tpu_custom_call.1} parent=1 // pred_check
      _
    $region27: #{tpu_custom_call.1} parent=1 // pred_check_branch
      %69 = sbr.rel (0) target = $region29
    $region28: #{tpu_custom_call.1} parent=1 // pred_region
      _
    $region29: #{tpu_custom_call.1} parent=1 // pred_fallthru
      _
    // Predicated region
    $region30: #{tpu_custom_call.1} parent=1 // pred_check
      _
    $region31: #{tpu_custom_call.1} parent=1 // pred_check_branch
      %71 = sbr.rel (0) target = $region33
    $region32: #{tpu_custom_call.1} parent=1 // pred_region
      _
    $region33: #{tpu_custom_call.1} parent=1 // pred_fallthru
      _
    // Predicated region
    $region34: #{tpu_custom_call.1} parent=1 // pred_check
      _
    $region35: #{tpu_custom_call.1} parent=1 // pred_check_branch
      %73 = sbr.rel (0) target = $region37
    $region36: #{tpu_custom_call.1} parent=1 // pred_region
      _
    $region37: #{tpu_custom_call.1} parent=1 // pred_fallthru
      _
    // Predicated region
    $region38: #{tpu_custom_call.1} parent=1 // pred_check
      _
    $region39: #{tpu_custom_call.1} parent=1 // pred_check_branch
      %75 = sbr.rel (0) target = $region41
    $region40: #{tpu_custom_call.1} parent=1 // pred_region
      _
    $region41: #{tpu_custom_call.1} parent=1 // pred_fallthru
      _
    // Predicated region
    $region42: #{tpu_custom_call.1} parent=1 // pred_check
      _
    $region43: #{tpu_custom_call.1} parent=1 // pred_check_branch
      %77 = sbr.rel (0) target = $region45
    $region44: #{tpu_custom_call.1} parent=1 // pred_region
      %s79 = ssub.s32 4096, 4096
      %80 = vsyncadd [#allocation11], %s79
      %s81 = sshll.u32 [#allocation10], 4
      %s82 = int_to_ptr.vmem [resolvable:$true] %s81
      %87 = dma.hbm_to_vmem [thread:$0]  %s10, 4096, %s82, [#allocation11], 256, 256, 16
    $region45: #{tpu_custom_call.1} parent=1 // pred_fallthru
      _
    // Predicated region
    $region46: #{tpu_custom_call.1} parent=1 // pred_check
      _
    $region47: #{tpu_custom_call.1} parent=1 // pred_check_branch
      %89 = sbr.rel (0) target = $region49
    $region48: #{tpu_custom_call.1} parent=1 // pred_region
      _
    $region49: #{tpu_custom_call.1} parent=1 // pred_fallthru
      _
    // Predicated region
    $region50: #{tpu_custom_call.1} parent=1 // pred_check
      _
    $region51: #{tpu_custom_call.1} parent=1 // pred_check_branch
      %91 = sbr.rel (0) target = $region53
    $region52: #{tpu_custom_call.1} parent=1 // pred_region
      %s93 = ssub.s32 4096, 4096
      %94 = vsyncadd [#allocation11], %s93
      %s95 = sshll.u32 [#allocation12], 4
      %s96 = int_to_ptr.vmem [resolvable:$true] %s95
      %101 = dma.hbm_to_vmem [thread:$0]  %s12, 4096, %s96, [#allocation11], 256, 256, 16
    $region53: #{tpu_custom_call.1} parent=1 // pred_fallthru
      _
    // Predicated region
    $region54: #{tpu_custom_call.1} parent=1 // pred_check
      _
    $region55: #{tpu_custom_call.1} parent=1 // pred_check_branch
      %103 = sbr.rel (0) target = $region57
    $region56: #{tpu_custom_call.1} parent=1 // pred_region
      _
    $region57: #{tpu_custom_call.1} parent=1 // pred_fallthru
      _
    // Predicated region
    $region58: #{tpu_custom_call.1} parent=1 // pred_check
      _
    $region59: #{tpu_custom_call.1} parent=1 // pred_check_branch
      %105 = sbr.rel (0) target = $region61
    $region60: #{tpu_custom_call.1} parent=1 // pred_region
      %s107 = ssub.s32 4096, 4096
      %108 = vsyncadd [#allocation14], %s107
      %s109 = sshll.u32 [#allocation13], 4
      %s110 = int_to_ptr.vmem [resolvable:$true] %s109
      %115 = dma.hbm_to_vmem [thread:$0]  %s14, 4096, %s110, [#allocation14], 64, 64, 4
    $region61: #{tpu_custom_call.1} parent=1 // pred_fallthru
      _
    // Predicated region
    $region62: #{tpu_custom_call.1} parent=1 // pred_check
      _
    $region63: #{tpu_custom_call.1} parent=1 // pred_check_branch
      %117 = sbr.rel (0) target = $region65
    $region64: #{tpu_custom_call.1} parent=1 // pred_region
      _
    $region65: #{tpu_custom_call.1} parent=1 // pred_fallthru
      _
    // Predicated region
    $region66: #{tpu_custom_call.1} parent=1 // pred_check
      _
    $region67: #{tpu_custom_call.1} parent=1 // pred_check_branch
      %119 = sbr.rel (0) target = $region69
    $region68: #{tpu_custom_call.1} parent=1 // pred_region
      %120 = dma.done [#allocation5], 1024
    $region69: #{tpu_custom_call.1} parent=1 // pred_fallthru
      _
    // Predicated region
    $region70: #{tpu_custom_call.1} parent=1 // pred_check
      _
    $region71: #{tpu_custom_call.1} parent=1 // pred_check_branch
      %122 = sbr.rel (0) target = $region73
    $region72: #{tpu_custom_call.1} parent=1 // pred_region
      %123 = dma.done [#allocation8], 1024
    $region73: #{tpu_custom_call.1} parent=1 // pred_fallthru
      _
    // Predicated region
    $region74: #{tpu_custom_call.1} parent=1 // pred_check
      _
    $region75: #{tpu_custom_call.1} parent=1 // pred_check_branch
      %125 = sbr.rel (0) target = $region77
    $region76: #{tpu_custom_call.1} parent=1 // pred_region
      %126 = dma.done [#allocation8], 1024
    $region77: #{tpu_custom_call.1} parent=1 // pred_fallthru
      _
    // Predicated region
    $region78: #{tpu_custom_call.1} parent=1 // pred_check
      _
    $region79: #{tpu_custom_call.1} parent=1 // pred_check_branch
      %128 = sbr.rel (0) target = $region81
    $region80: #{tpu_custom_call.1} parent=1 // pred_region
      %129 = dma.done [#allocation11], 4096
    $region81: #{tpu_custom_call.1} parent=1 // pred_fallthru
      _
    // Predicated region
    $region82: #{tpu_custom_call.1} parent=1 // pred_check
      _
    $region83: #{tpu_custom_call.1} parent=1 // pred_check_branch
      %131 = sbr.rel (0) target = $region85
    $region84: #{tpu_custom_call.1} parent=1 // pred_region
      %132 = dma.done [#allocation11], 4096
    $region85: #{tpu_custom_call.1} parent=1 // pred_fallthru
      _
    // Predicated region
    $region86: #{tpu_custom_call.1} parent=1 // pred_check
      _
    $region87: #{tpu_custom_call.1} parent=1 // pred_check_branch
      %134 = sbr.rel (0) target = $region89
    $region88: #{tpu_custom_call.1} parent=1 // pred_region
      %135 = dma.done [#allocation14], 4096
    $region89: #{tpu_custom_call.1} parent=1 // pred_fallthru
      _
    %p137 = scmp.eq.s32.totalorder 0, 0
    // Predicated region
    $region90: #{tpu_custom_call.1} parent=1 // pred_check
      %p138 = pneg %p137
    $region91: #{tpu_custom_call.1} parent=1 // pred_check_branch
      %140 = sbr.rel (%p138) target = $region93
    $region92: #{tpu_custom_call.1} parent=1 // pred_region
      %v141 = vld [vmem:[%s0] sm:$0xf]
      %v142 = vld [vmem:[%s0 + $0x4] sm:$0xf]
      %v143 = vld [vmem:[%s0 + $0x8] sm:$0xf]
      %v144 = vld [vmem:[%s0 + $0xc] sm:$0xf]
      %v145 = vunpack.c.l.bf16 %v141
      %v146 = vunpack.c.l.bf16 %v142
      %v147 = vunpack.c.l.bf16 %v143
      %v148 = vunpack.c.l.bf16 %v144
      %v149 = vld [vmem:[%s1] sm:$0x1]
      %v150 = vld [vmem:[%s2] sm:$0x1]
      %151 = vadd.xlane.f32.xlu0 %v145
      %v152 = vpop.xlane.xlu0 %151
      %153 = vadd.xlane.f32.xlu0 %v146
      %v154 = vpop.xlane.xlu0 %153
      %155 = vadd.xlane.f32.xlu0 %v147
      %v156 = vpop.xlane.xlu0 %155
      %157 = vadd.xlane.f32.xlu0 %v148
      %v158 = vpop.xlane.xlu0 %157
      %v159 = vrcp.pop 128.0
      %v160 = vmul.f32 %v152, %v159
      %v161 = vmul.f32 %v154, %v159
      %v162 = vmul.f32 %v156, %v159
      %v163 = vmul.f32 %v158, %v159
      %v164 = vsub.f32 %v145, %v160
      %v165 = vsub.f32 %v146, %v161
      %v166 = vsub.f32 %v147, %v162
      %v167 = vsub.f32 %v148, %v163
      %v168 = vmul.f32 %v164, %v164
      %v169 = vmul.f32 %v165, %v165
      %v170 = vmul.f32 %v166, %v166
      %v171 = vmul.f32 %v167, %v167
      %172 = vadd.xlane.f32.xlu0 %v168
      %v173 = vpop.xlane.xlu0 %172
      %174 = vadd.xlane.f32.xlu0 %v169
      %v175 = vpop.xlane.xlu0 %174
      %176 = vadd.xlane.f32.xlu0 %v170
      %v177 = vpop.xlane.xlu0 %176
      %178 = vadd.xlane.f32.xlu0 %v171
      %v179 = vpop.xlane.xlu0 %178
      %v180 = vmul.f32 %v173, %v159
      %v181 = vmul.f32 %v175, %v159
      %v182 = vmul.f32 %v177, %v159
      %v183 = vmul.f32 %v179, %v159
      %v184 = vadd.f32 %v180, 1e-05
      %v185 = vadd.f32 %v181, 1e-05
      %v186 = vadd.f32 %v182, 1e-05
      %v187 = vadd.f32 %v183, 1e-05
      %v188 = vrsqrt.pop %v184
      %v189 = vrsqrt.pop %v185
      %v190 = vrsqrt.pop %v186
      %v191 = vrsqrt.pop %v187
      %v192 = vmul.f32 %v164, %v188
      %v193 = vmul.f32 %v165, %v189
      %v194 = vmul.f32 %v166, %v190
      %v195 = vmul.f32 %v167, %v191
      %v197 = vlaneseq
      %v198 = vshrl.u32 %v197, 7
      %v199 = vsub.s32 0, %v198
      %v200 = vrot.slane %v149, %v199
      %v202 = vmul.f32 %v192, %v200
      %v203 = vmul.f32 %v193, %v200
      %v204 = vmul.f32 %v194, %v200
      %v205 = vmul.f32 %v195, %v200
      %v207 = vlaneseq
      %v208 = vshrl.u32 %v207, 7
      %v209 = vsub.s32 0, %v208
      %v210 = vrot.slane %v150, %v209
      %v212 = vadd.f32 %v202, %v210
      %v213 = vadd.f32 %v203, %v210
      %v214 = vadd.f32 %v204, %v210
      %v215 = vadd.f32 %v205, %v210
      %v216 = vpack.c.bf16 %v213, %v212
      %v217 = vpack.c.bf16 %v215, %v214
      %v218 = vld [vmem:[#allocation4] sm:$0xf]
      %v219 = vld [vmem:[#allocation4 + $0x4] sm:$0xf]
      %v220 = vld [vmem:[#allocation4 + $0x8] sm:$0xf]
      %v221 = vld [vmem:[#allocation4 + $0xc] sm:$0xf]
      %v222 = vld [vmem:[#allocation4 + $0x10] sm:$0xf]
      %v223 = vld [vmem:[#allocation4 + $0x14] sm:$0xf]
      %v224 = vld [vmem:[#allocation4 + $0x18] sm:$0xf]
      %v225 = vld [vmem:[#allocation4 + $0x1c] sm:$0xf]
      %v226 = vld [vmem:[#allocation4 + $0x20] sm:$0xf]
      %v227 = vld [vmem:[#allocation4 + $0x24] sm:$0xf]
      %v228 = vld [vmem:[#allocation4 + $0x28] sm:$0xf]
      %v229 = vld [vmem:[#allocation4 + $0x2c] sm:$0xf]
      %v230 = vld [vmem:[#allocation4 + $0x30] sm:$0xf]
      %v231 = vld [vmem:[#allocation4 + $0x34] sm:$0xf]
      %v232 = vld [vmem:[#allocation4 + $0x38] sm:$0xf]
      %v233 = vld [vmem:[#allocation4 + $0x3c] sm:$0xf]
      %v250 = vunpack.c.l.b16 %v218
      %v251 = vunpack.c.l.b16 %v219
      %v252 = vunpack.c.l.b16 %v220
      %v253 = vunpack.c.l.b16 %v221
      %v254 = vunpack.c.l.b16 %v222
      %v255 = vunpack.c.l.b16 %v223
      %v256 = vunpack.c.l.b16 %v224
      %v257 = vunpack.c.l.b16 %v225
      %v258 = vunpack.c.l.b16 %v226
      %v259 = vunpack.c.l.b16 %v227
      %v260 = vunpack.c.l.b16 %v228
      %v261 = vunpack.c.l.b16 %v229
      %v262 = vunpack.c.l.b16 %v230
      %v263 = vunpack.c.l.b16 %v231
      %v264 = vunpack.c.l.b16 %v232
      %v265 = vunpack.c.l.b16 %v233
      %v266 = vpack.c.b16 %v251, %v250
      %v267 = vpack.c.b16 %v253, %v252
      %v268 = vpack.c.b16 %v255, %v254
      %v269 = vpack.c.b16 %v257, %v256
      %v270 = vpack.c.b16 %v259, %v258
      %v271 = vpack.c.b16 %v261, %v260
      %v272 = vpack.c.b16 %v263, %v262
      %v273 = vpack.c.b16 %v265, %v264
      %282 = vmatprep.subr.bf16.mxu0 0
      %283 = vmatpush1.bf16.msra.mxu0 %v266
      %284 = vmatprep.subr.bf16.mxu0 0
      %285 = vmatpush1.bf16.msra.mxu0 %v267
      %286 = vmatprep.subr.bf16.mxu0 0
      %287 = vmatpush1.bf16.msra.mxu0 %v268
      %288 = vmatprep.subr.bf16.mxu0 0
      %289 = vmatpush1.bf16.msra.mxu0 %v269
      %290 = vmatprep.subr.bf16.mxu0 0
      %291 = vmatpush1.bf16.msra.mxu0 %v270
      %292 = vmatprep.subr.bf16.mxu0 0
      %293 = vmatpush1.bf16.msra.mxu0 %v271
      %294 = vmatprep.subr.bf16.mxu0 0
      %295 = vmatpush1.bf16.msra.mxu0 %v272
      %296 = vmatprep.subr.bf16.mxu0 0
      %297 = vmatpush1.bf16.msra.mxu0 %v273
      %298 = vmatprep.subr.bf16.mxu0 0
      %299 = vmatpush1.bf16.msra.mxu0 0
      %300 = vmatprep.subr.bf16.mxu0 0
      %301 = vmatpush1.bf16.msra.mxu0 0
      %302 = vmatprep.subr.bf16.mxu0 0
      %303 = vmatpush1.bf16.msra.mxu0 0
      %304 = vmatprep.subr.bf16.mxu0 0
      %305 = vmatpush1.bf16.msra.mxu0 0
      %306 = vmatprep.subr.bf16.mxu0 0
      %307 = vmatpush1.bf16.msra.mxu0 0
      %308 = vmatprep.subr.bf16.mxu0 0
      %309 = vmatpush1.bf16.msra.mxu0 0
      %310 = vmatprep.subr.bf16.mxu0 0
      %311 = vmatpush1.bf16.msra.mxu0 0
      %312 = vmatprep.subr.bf16.mxu0 0
      %313 = vmatpush1.bf16.msra.mxu0 0
      %314 = vmatprep.mubr.bf16.mxu0 0
      %315 = vmatmul.mubr.bf16.gmra.mrb[0].mxu0 %v216
      %v316 = vpop.f32.mrb[0].mxu0
      %v317 = vadd.f32 0.0, %v316
      %v318 = vpop.f32.mrb[0].mxu0
      %v319 = vpop.f32.mrb[0].mxu0
      %v320 = vadd.f32 0.0, %v319
      %v321 = vpop.f32.mrb[0].mxu0
      %322 = vmatprep.mubr.bf16.mxu0 0
      %323 = vmatmul.mubr.bf16.gmra.mrb[0].mxu0 %v217
      %v324 = vpop.f32.mrb[0].mxu0
      %v325 = vadd.f32 0.0, %v324
      %v326 = vpop.f32.mrb[0].mxu0
      %v327 = vpop.f32.mrb[0].mxu0
      %v328 = vadd.f32 0.0, %v327
      %v329 = vpop.f32.mrb[0].mxu0
      %330 = vdwg.mxu0
      %v331 = vld [vmem:[#allocation7] sm:$0xf]
      %v332 = vld [vmem:[#allocation7 + $0x4] sm:$0xf]
      %v333 = vld [vmem:[#allocation7 + $0x8] sm:$0xf]
      %v334 = vld [vmem:[#allocation7 + $0xc] sm:$0xf]
      %v335 = vld [vmem:[#allocation7 + $0x10] sm:$0xf]
      %v336 = vld [vmem:[#allocation7 + $0x14] sm:$0xf]
      %v337 = vld [vmem:[#allocation7 + $0x18] sm:$0xf]
      %v338 = vld [vmem:[#allocation7 + $0x1c] sm:$0xf]
      %v339 = vld [vmem:[#allocation7 + $0x20] sm:$0xf]
      %v340 = vld [vmem:[#allocation7 + $0x24] sm:$0xf]
      %v341 = vld [vmem:[#allocation7 + $0x28] sm:$0xf]
      %v342 = vld [vmem:[#allocation7 + $0x2c] sm:$0xf]
      %v343 = vld [vmem:[#allocation7 + $0x30] sm:$0xf]
      %v344 = vld [vmem:[#allocation7 + $0x34] sm:$0xf]
      %v345 = vld [vmem:[#allocation7 + $0x38] sm:$0xf]
      %v346 = vld [vmem:[#allocation7 + $0x3c] sm:$0xf]
      %v363 = vunpack.c.l.b16 %v331
      %v364 = vunpack.c.l.b16 %v332
      %v365 = vunpack.c.l.b16 %v333
      %v366 = vunpack.c.l.b16 %v334
      %v367 = vunpack.c.l.b16 %v335
      %v368 = vunpack.c.l.b16 %v336
      %v369 = vunpack.c.l.b16 %v337
      %v370 = vunpack.c.l.b16 %v338
      %v371 = vunpack.c.l.b16 %v339
      %v372 = vunpack.c.l.b16 %v340
      %v373 = vunpack.c.l.b16 %v341
      %v374 = vunpack.c.l.b16 %v342
      %v375 = vunpack.c.l.b16 %v343
      %v376 = vunpack.c.l.b16 %v344
      %v377 = vunpack.c.l.b16 %v345
      %v378 = vunpack.c.l.b16 %v346
      %v379 = vpack.c.b16 %v364, %v363
      %v380 = vpack.c.b16 %v366, %v365
      %v381 = vpack.c.b16 %v368, %v367
      %v382 = vpack.c.b16 %v370, %v369
      %v383 = vpack.c.b16 %v372, %v371
      %v384 = vpack.c.b16 %v374, %v373
      %v385 = vpack.c.b16 %v376, %v375
      %v386 = vpack.c.b16 %v378, %v377
      %395 = vmatprep.subr.bf16.mxu0 0
      %396 = vmatpush1.bf16.msra.mxu0 %v379
      %397 = vmatprep.subr.bf16.mxu0 0
      %398 = vmatpush1.bf16.msra.mxu0 %v380
      %399 = vmatprep.subr.bf16.mxu0 0
      %400 = vmatpush1.bf16.msra.mxu0 %v381
      %401 = vmatprep.subr.bf16.mxu0 0
      %402 = vmatpush1.bf16.msra.mxu0 %v382
      %403 = vmatprep.subr.bf16.mxu0 0
      %404 = vmatpush1.bf16.msra.mxu0 %v383
      %405 = vmatprep.subr.bf16.mxu0 0
      %406 = vmatpush1.bf16.msra.mxu0 %v384
      %407 = vmatprep.subr.bf16.mxu0 0
      %408 = vmatpush1.bf16.msra.mxu0 %v385
      %409 = vmatprep.subr.bf16.mxu0 0
      %410 = vmatpush1.bf16.msra.mxu0 %v386
      %411 = vmatprep.subr.bf16.mxu0 0
      %412 = vmatpush1.bf16.msra.mxu0 0
      %413 = vmatprep.subr.bf16.mxu0 0
      %414 = vmatpush1.bf16.msra.mxu0 0
      %415 = vmatprep.subr.bf16.mxu0 0
      %416 = vmatpush1.bf16.msra.mxu0 0
      %417 = vmatprep.subr.bf16.mxu0 0
      %418 = vmatpush1.bf16.msra.mxu0 0
      %419 = vmatprep.subr.bf16.mxu0 0
      %420 = vmatpush1.bf16.msra.mxu0 0
      %421 = vmatprep.subr.bf16.mxu0 0
      %422 = vmatpush1.bf16.msra.mxu0 0
      %423 = vmatprep.subr.bf16.mxu0 0
      %424 = vmatpush1.bf16.msra.mxu0 0
      %425 = vmatprep.subr.bf16.mxu0 0
      %426 = vmatpush1.bf16.msra.mxu0 0
      %427 = vmatprep.mubr.bf16.mxu0 0
      %428 = vmatmul.mubr.bf16.gmra.mrb[0].mxu0 %v216
      %v429 = vpop.f32.mrb[0].mxu0
      %v430 = vadd.f32 0.0, %v429
      %v431 = vpop.f32.mrb[0].mxu0
      %v432 = vpop.f32.mrb[0].mxu0
      %v433 = vadd.f32 0.0, %v432
      %v434 = vpop.f32.mrb[0].mxu0
      %435 = vmatprep.mubr.bf16.mxu0 0
      %436 = vmatmul.mubr.bf16.gmra.mrb[0].mxu0 %v217
      %v437 = vpop.f32.mrb[0].mxu0
      %v438 = vadd.f32 0.0, %v437
      %v439 = vpop.f32.mrb[0].mxu0
      %v440 = vpop.f32.mrb[0].mxu0
      %v441 = vadd.f32 0.0, %v440
      %v442 = vpop.f32.mrb[0].mxu0
      %443 = vdwg.mxu0
      %v444 = vpack.c.bf16 %v320, %v317
      %v445 = vpack.c.bf16 %v328, %v325
      %v446 = vpack.c.bf16 %v433, %v430
      %v447 = vpack.c.bf16 %v441, %v438
      %v448 = vld [vmem:[%s7] sm:$0xf]
      %v449 = vld [vmem:[%s7 + $0x4] sm:$0xf]
      %v450 = vld [vmem:[%s7 + $0x8] sm:$0xf]
      %v451 = vld [vmem:[%s7 + $0xc] sm:$0xf]
      %v452 = vunpack.c.l.bf16 %v448
      %v453 = vunpack.c.l.bf16 %v449
      %v454 = vunpack.c.l.bf16 %v450
      %v455 = vunpack.c.l.bf16 %v451
      %457 = vrot.lane.b32.xlu0 %v444, 64
      %v458 = vpop.permute.xlu0 %457
      %vm459 = vcmask 523264
      %v461 = vsel %vm459, %v444, 0
      %v464 = vsel %vm459, %v458, 0
      %v467 = vsel %vm459, %v446, 0
      %469 = vmatprep.subr.bf16.mxu0 0
      %470 = vmatpush1.bf16.xpose.msra.mxu0 %v467
      %471 = vmatprep.subr.bf16.mxu0 0
      %472 = vmatpush1.bf16.xpose.msra.mxu0 0
      %473 = vmatprep.subr.bf16.mxu0 0
      %474 = vmatpush1.bf16.xpose.msra.mxu0 0
      %475 = vmatprep.subr.bf16.mxu0 0
      %476 = vmatpush1.bf16.xpose.msra.mxu0 0
      %477 = vmatprep.subr.bf16.mxu0 0
      %478 = vmatpush1.bf16.xpose.msra.mxu0 0
      %479 = vmatprep.subr.bf16.mxu0 0
      %480 = vmatpush1.bf16.xpose.msra.mxu0 0
      %481 = vmatprep.subr.bf16.mxu0 0
      %482 = vmatpush1.bf16.xpose.msra.mxu0 0
      %483 = vmatprep.subr.bf16.mxu0 0
      %484 = vmatpush1.bf16.xpose.msra.mxu0 0
      %485 = vmatprep.subr.bf16.mxu0 0
      %486 = vmatpush1.bf16.xpose.msra.mxu0 0
      %487 = vmatprep.subr.bf16.mxu0 0
      %488 = vmatpush1.bf16.xpose.msra.mxu0 0
      %489 = vmatprep.subr.bf16.mxu0 0
      %490 = vmatpush1.bf16.xpose.msra.mxu0 0
      %491 = vmatprep.subr.bf16.mxu0 0
      %492 = vmatpush1.bf16.xpose.msra.mxu0 0
      %493 = vmatprep.subr.bf16.mxu0 0
      %494 = vmatpush1.bf16.xpose.msra.mxu0 0
      %495 = vmatprep.subr.bf16.mxu0 0
      %496 = vmatpush1.bf16.xpose.msra.mxu0 0
      %497 = vmatprep.subr.bf16.mxu0 0
      %498 = vmatpush1.bf16.xpose.msra.mxu0 0
      %499 = vmatprep.subr.bf16.mxu0 0
      %500 = vmatpush1.bf16.xpose.msra.mxu0 0
      %501 = vmatprep.mubr.bf16.mxu0 0
      %502 = vmatmul.mubr.bf16.gmra.mrb[0].mxu0 %v461
      %v503 = vpop.f32.mrb[0].mxu0
      %v504 = vadd.f32 %v452, %v503
      %v505 = vpop.f32.mrb[0].mxu0
      %v506 = vpop.f32.mrb[0].mxu0
      %v507 = vadd.f32 %v453, %v506
      %v508 = vpop.f32.mrb[0].mxu0
      %509 = vmatprep.mubr.bf16.mxu0 0
      %510 = vmatmul.mubr.bf16.gmra.mrb[0].mxu0 %v464
      %v511 = vpop.f32.mrb[0].mxu0
      %v512 = vadd.f32 %v454, %v511
      %v513 = vpop.f32.mrb[0].mxu0
      %v514 = vpop.f32.mrb[0].mxu0
      %v515 = vadd.f32 %v455, %v514
      %v516 = vpop.f32.mrb[0].mxu0
      %517 = vdwg.mxu0
      %vm518 = vcmask 130048
      %v519 = vsel %vm518, %v504, -inf
      %520 = vmax.xlane.f32.xlu0 %v519
      %v521 = vpop.xlane.xlu0 %520
      %v522 = vsel %vm518, %v507, -inf
      %523 = vmax.xlane.f32.xlu0 %v522
      %v524 = vpop.xlane.xlu0 %523
      %v525 = vsel %vm518, %v512, -inf
      %526 = vmax.xlane.f32.xlu0 %v525
      %v527 = vpop.xlane.xlu0 %526
      %v528 = vsel %vm518, %v515, -inf
      %529 = vmax.xlane.f32.xlu0 %v528
      %v530 = vpop.xlane.xlu0 %529
      %v531 = vsub.f32 %v504, %v521
      %v532 = vsub.f32 %v507, %v524
      %v533 = vsub.f32 %v512, %v527
      %v534 = vsub.f32 %v515, %v530
      %v535 = vmul.f32 %v531, 1.442695
      %v536 = vpow.pop %v535
      %v537 = vmul.f32 %v532, 1.442695
      %v538 = vpow.pop %v537
      %v539 = vmul.f32 %v533, 1.442695
      %v540 = vpow.pop %v539
      %v541 = vmul.f32 %v534, 1.442695
      %v542 = vpow.pop %v541
      %v543 = vsel %vm518, %v536, 0.0
      %544 = vadd.xlane.f32.xlu0 %v543
      %v545 = vpop.xlane.xlu0 %544
      %v546 = vsel %vm518, %v538, 0.0
      %547 = vadd.xlane.f32.xlu0 %v546
      %v548 = vpop.xlane.xlu0 %547
      %v549 = vsel %vm518, %v540, 0.0
      %550 = vadd.xlane.f32.xlu0 %v549
      %v551 = vpop.xlane.xlu0 %550
      %v552 = vsel %vm518, %v542, 0.0
      %553 = vadd.xlane.f32.xlu0 %v552
      %v554 = vpop.xlane.xlu0 %553
      %v555 = vrcp.pop %v545
      %v556 = vrcp.pop %v548
      %v557 = vrcp.pop %v551
      %v558 = vrcp.pop %v554
      %v559 = vmul.f32 %v536, %v555
      %v560 = vmul.f32 %v538, %v556
      %v561 = vmul.f32 %v540, %v557
      %v562 = vmul.f32 %v542, %v558
      %v563 = vpack.c.bf16 %v560, %v559
      %v564 = vpack.c.bf16 %v562, %v561
      %566 = vrot.lane.b32.xlu0 %v446, 64
      %v567 = vpop.permute.xlu0 %566
      %v570 = vsel %vm518, %v563, 0
      %v573 = vsel %vm518, %v564, 0
      %575 = vmatprep.subr.bf16.mxu0 0
      %576 = vmatpush1.bf16.msra.mxu0 %v567
      %577 = vmatprep.subr.bf16.mxu0 0
      %578 = vmatpush1.bf16.msra.mxu0 0
      %579 = vmatprep.subr.bf16.mxu0 0
      %580 = vmatpush1.bf16.msra.mxu0 0
      %581 = vmatprep.subr.bf16.mxu0 0
      %582 = vmatpush1.bf16.msra.mxu0 0
      %583 = vmatprep.subr.bf16.mxu0 0
      %584 = vmatpush1.bf16.msra.mxu0 0
      %585 = vmatprep.subr.bf16.mxu0 0
      %586 = vmatpush1.bf16.msra.mxu0 0
      %587 = vmatprep.subr.bf16.mxu0 0
      %588 = vmatpush1.bf16.msra.mxu0 0
      %589 = vmatprep.subr.bf16.mxu0 0
      %590 = vmatpush1.bf16.msra.mxu0 0
      %591 = vmatprep.subr.bf16.mxu0 0
      %592 = vmatpush1.bf16.msra.mxu0 0
      %593 = vmatprep.subr.bf16.mxu0 0
      %594 = vmatpush1.bf16.msra.mxu0 0
      %595 = vmatprep.subr.bf16.mxu0 0
      %596 = vmatpush1.bf16.msra.mxu0 0
      %597 = vmatprep.subr.bf16.mxu0 0
      %598 = vmatpush1.bf16.msra.mxu0 0
      %599 = vmatprep.subr.bf16.mxu0 0
      %600 = vmatpush1.bf16.msra.mxu0 0
      %601 = vmatprep.subr.bf16.mxu0 0
      %602 = vmatpush1.bf16.msra.mxu0 0
      %603 = vmatprep.subr.bf16.mxu0 0
      %604 = vmatpush1.bf16.msra.mxu0 0
      %605 = vmatprep.subr.bf16.mxu0 0
      %606 = vmatpush1.bf16.msra.mxu0 0
      %607 = vmatprep.mubr.bf16.mxu0 0
      %608 = vmatmul.mubr.bf16.gmra.mrb[0].mxu0 %v570
      %v609 = vpop.f32.mrb[0].mxu0
      %v610 = vadd.f32 0.0, %v609
      %v611 = vpop.f32.mrb[0].mxu0
      %v612 = vpop.f32.mrb[0].mxu0
      %v613 = vadd.f32 0.0, %v612
      %v614 = vpop.f32.mrb[0].mxu0
      %615 = vmatprep.mubr.bf16.mxu0 0
      %616 = vmatmul.mubr.bf16.gmra.mrb[0].mxu0 %v573
      %v617 = vpop.f32.mrb[0].mxu0
      %v618 = vadd.f32 0.0, %v617
      %v619 = vpop.f32.mrb[0].mxu0
      %v620 = vpop.f32.mrb[0].mxu0
      %v621 = vadd.f32 0.0, %v620
      %v622 = vpop.f32.mrb[0].mxu0
      %623 = vdwg.mxu0
      %626 = vrot.lane.b32.xlu0 %v618, 64
      %v627 = vpop.permute.xlu0 %626
      %628 = vrot.lane.b32.xlu0 %v621, 64
      %v629 = vpop.permute.xlu0 %628
      %v632 = vsel %vm459, %v610, %v627
      %v633 = vsel %vm459, %v613, %v629
      %635 = vrot.lane.b32.xlu0 %v445, 64
      %v636 = vpop.permute.xlu0 %635
      %v638 = vsel %vm459, %v445, 0
      %v641 = vsel %vm459, %v636, 0
      %v644 = vsel %vm459, %v447, 0
      %646 = vmatprep.subr.bf16.mxu0 0
      %647 = vmatpush1.bf16.xpose.msra.mxu0 %v644
      %648 = vmatprep.subr.bf16.mxu0 0
      %649 = vmatpush1.bf16.xpose.msra.mxu0 0
      %650 = vmatprep.subr.bf16.mxu0 0
      %651 = vmatpush1.bf16.xpose.msra.mxu0 0
      %652 = vmatprep.subr.bf16.mxu0 0
      %653 = vmatpush1.bf16.xpose.msra.mxu0 0
      %654 = vmatprep.subr.bf16.mxu0 0
      %655 = vmatpush1.bf16.xpose.msra.mxu0 0
      %656 = vmatprep.subr.bf16.mxu0 0
      %657 = vmatpush1.bf16.xpose.msra.mxu0 0
      %658 = vmatprep.subr.bf16.mxu0 0
      %659 = vmatpush1.bf16.xpose.msra.mxu0 0
      %660 = vmatprep.subr.bf16.mxu0 0
      %661 = vmatpush1.bf16.xpose.msra.mxu0 0
      %662 = vmatprep.subr.bf16.mxu0 0
      %663 = vmatpush1.bf16.xpose.msra.mxu0 0
      %664 = vmatprep.subr.bf16.mxu0 0
      %665 = vmatpush1.bf16.xpose.msra.mxu0 0
      %666 = vmatprep.subr.bf16.mxu0 0
      %667 = vmatpush1.bf16.xpose.msra.mxu0 0
      %668 = vmatprep.subr.bf16.mxu0 0
      %669 = vmatpush1.bf16.xpose.msra.mxu0 0
      %670 = vmatprep.subr.bf16.mxu0 0
      %671 = vmatpush1.bf16.xpose.msra.mxu0 0
      %672 = vmatprep.subr.bf16.mxu0 0
      %673 = vmatpush1.bf16.xpose.msra.mxu0 0
      %674 = vmatprep.subr.bf16.mxu0 0
      %675 = vmatpush1.bf16.xpose.msra.mxu0 0
      %676 = vmatprep.subr.bf16.mxu0 0
      %677 = vmatpush1.bf16.xpose.msra.mxu0 0
      %678 = vmatprep.mubr.bf16.mxu0 0
      %679 = vmatmul.mubr.bf16.gmra.mrb[0].mxu0 %v638
      %v680 = vpop.f32.mrb[0].mxu0
      %v681 = vadd.f32 %v452, %v680
      %v682 = vpop.f32.mrb[0].mxu0
      %v683 = vpop.f32.mrb[0].mxu0
      %v684 = vadd.f32 %v453, %v683
      %v685 = vpop.f32.mrb[0].mxu0
      %686 = vmatprep.mubr.bf16.mxu0 0
      %687 = vmatmul.mubr.bf16.gmra.mrb[0].mxu0 %v641
      %v688 = vpop.f32.mrb[0].mxu0
      %v689 = vadd.f32 %v454, %v688
      %v690 = vpop.f32.mrb[0].mxu0
      %v691 = vpop.f32.mrb[0].mxu0
      %v692 = vadd.f32 %v455, %v691
      %v693 = vpop.f32.mrb[0].mxu0
      %694 = vdwg.mxu0
      %v695 = vsel %vm518, %v681, -inf
      %696 = vmax.xlane.f32.xlu0 %v695
      %v697 = vpop.xlane.xlu0 %696
      %v698 = vsel %vm518, %v684, -inf
      %699 = vmax.xlane.f32.xlu0 %v698
      %v700 = vpop.xlane.xlu0 %699
      %v701 = vsel %vm518, %v689, -inf
      %702 = vmax.xlane.f32.xlu0 %v701
      %v703 = vpop.xlane.xlu0 %702
      %v704 = vsel %vm518, %v692, -inf
      %705 = vmax.xlane.f32.xlu0 %v704
      %v706 = vpop.xlane.xlu0 %705
      %v707 = vsub.f32 %v681, %v697
      %v708 = vsub.f32 %v684, %v700
      %v709 = vsub.f32 %v689, %v703
      %v710 = vsub.f32 %v692, %v706
      %v711 = vmul.f32 %v707, 1.442695
      %v712 = vpow.pop %v711
      %v713 = vmul.f32 %v708, 1.442695
      %v714 = vpow.pop %v713
      %v715 = vmul.f32 %v709, 1.442695
      %v716 = vpow.pop %v715
      %v717 = vmul.f32 %v710, 1.442695
      %v718 = vpow.pop %v717
      %v719 = vsel %vm518, %v712, 0.0
      %720 = vadd.xlane.f32.xlu0 %v719
      %v721 = vpop.xlane.xlu0 %720
      %v722 = vsel %vm518, %v714, 0.0
      %723 = vadd.xlane.f32.xlu0 %v722
      %v724 = vpop.xlane.xlu0 %723
      %v725 = vsel %vm518, %v716, 0.0
      %726 = vadd.xlane.f32.xlu0 %v725
      %v727 = vpop.xlane.xlu0 %726
      %v728 = vsel %vm518, %v718, 0.0
      %729 = vadd.xlane.f32.xlu0 %v728
      %v730 = vpop.xlane.xlu0 %729
      %v731 = vrcp.pop %v721
      %v732 = vrcp.pop %v724
      %v733 = vrcp.pop %v727
      %v734 = vrcp.pop %v730
      %v735 = vmul.f32 %v712, %v731
      %v736 = vmul.f32 %v714, %v732
      %v737 = vmul.f32 %v716, %v733
      %v738 = vmul.f32 %v718, %v734
      %v739 = vpack.c.bf16 %v736, %v735
      %v740 = vpack.c.bf16 %v738, %v737
      %742 = vrot.lane.b32.xlu0 %v447, 64
      %v743 = vpop.permute.xlu0 %742
      %v746 = vsel %vm518, %v739, 0
      %v749 = vsel %vm518, %v740, 0
      %751 = vmatprep.subr.bf16.mxu0 0
      %752 = vmatpush1.bf16.msra.mxu0 %v743
      %753 = vmatprep.subr.bf16.mxu0 0
      %754 = vmatpush1.bf16.msra.mxu0 0
      %755 = vmatprep.subr.bf16.mxu0 0
      %756 = vmatpush1.bf16.msra.mxu0 0
      %757 = vmatprep.subr.bf16.mxu0 0
      %758 = vmatpush1.bf16.msra.mxu0 0
      %759 = vmatprep.subr.bf16.mxu0 0
      %760 = vmatpush1.bf16.msra.mxu0 0
      %761 = vmatprep.subr.bf16.mxu0 0
      %762 = vmatpush1.bf16.msra.mxu0 0
      %763 = vmatprep.subr.bf16.mxu0 0
      %764 = vmatpush1.bf16.msra.mxu0 0
      %765 = vmatprep.subr.bf16.mxu0 0
      %766 = vmatpush1.bf16.msra.mxu0 0
      %767 = vmatprep.subr.bf16.mxu0 0
      %768 = vmatpush1.bf16.msra.mxu0 0
      %769 = vmatprep.subr.bf16.mxu0 0
      %770 = vmatpush1.bf16.msra.mxu0 0
      %771 = vmatprep.subr.bf16.mxu0 0
      %772 = vmatpush1.bf16.msra.mxu0 0
      %773 = vmatprep.subr.bf16.mxu0 0
      %774 = vmatpush1.bf16.msra.mxu0 0
      %775 = vmatprep.subr.bf16.mxu0 0
      %776 = vmatpush1.bf16.msra.mxu0 0
      %777 = vmatprep.subr.bf16.mxu0 0
      %778 = vmatpush1.bf16.msra.mxu0 0
      %779 = vmatprep.subr.bf16.mxu0 0
      %780 = vmatpush1.bf16.msra.mxu0 0
      %781 = vmatprep.subr.bf16.mxu0 0
      %782 = vmatpush1.bf16.msra.mxu0 0
      %783 = vmatprep.mubr.bf16.mxu0 0
      %784 = vmatmul.mubr.bf16.gmra.mrb[0].mxu0 %v746
      %v785 = vpop.f32.mrb[0].mxu0
      %v786 = vadd.f32 0.0, %v785
      %v787 = vpop.f32.mrb[0].mxu0
      %v788 = vpop.f32.mrb[0].mxu0
      %v789 = vadd.f32 0.0, %v788
      %v790 = vpop.f32.mrb[0].mxu0
      %791 = vmatprep.mubr.bf16.mxu0 0
      %792 = vmatmul.mubr.bf16.gmra.mrb[0].mxu0 %v749
      %v793 = vpop.f32.mrb[0].mxu0
      %v794 = vadd.f32 0.0, %v793
      %v795 = vpop.f32.mrb[0].mxu0
      %v796 = vpop.f32.mrb[0].mxu0
      %v797 = vadd.f32 0.0, %v796
      %v798 = vpop.f32.mrb[0].mxu0
      %799 = vdwg.mxu0
      %802 = vrot.lane.b32.xlu0 %v794, 64
      %v803 = vpop.permute.xlu0 %802
      %804 = vrot.lane.b32.xlu0 %v797, 64
      %v805 = vpop.permute.xlu0 %804
      %v808 = vsel %vm459, %v786, %v803
      %v809 = vsel %vm459, %v789, %v805
      %v810 = vpack.c.bf16 %v633, %v632
      %v811 = vpack.c.bf16 %v809, %v808
      %v812 = vld [vmem:[#allocation9] sm:$0xf]
      %v813 = vld [vmem:[#allocation9 + $0x4] sm:$0xf]
      %v814 = vld [vmem:[#allocation9 + $0x8] sm:$0xf]
      %v815 = vld [vmem:[#allocation9 + $0xc] sm:$0xf]
      %v816 = vld [vmem:[#allocation9 + $0x10] sm:$0xf]
      %v817 = vld [vmem:[#allocation9 + $0x14] sm:$0xf]
      %v818 = vld [vmem:[#allocation9 + $0x18] sm:$0xf]
      %v819 = vld [vmem:[#allocation9 + $0x1c] sm:$0xf]
      %v820 = vld [vmem:[#allocation9 + $0x20] sm:$0xf]
      %v821 = vld [vmem:[#allocation9 + $0x24] sm:$0xf]
      %v822 = vld [vmem:[#allocation9 + $0x28] sm:$0xf]
      %v823 = vld [vmem:[#allocation9 + $0x2c] sm:$0xf]
      %v824 = vld [vmem:[#allocation9 + $0x30] sm:$0xf]
      %v825 = vld [vmem:[#allocation9 + $0x34] sm:$0xf]
      %v826 = vld [vmem:[#allocation9 + $0x38] sm:$0xf]
      %v827 = vld [vmem:[#allocation9 + $0x3c] sm:$0xf]
      %v828 = vld [vmem:[%s6] sm:$0x1]
      %v830 = vlaneseq
      %v831 = vshrl.u32 %v830, 7
      %v832 = vsub.s32 0, %v831
      %v833 = vrot.slane %v828, %v832
      %v851 = vunpack.c.l.b16 %v812
      %v852 = vunpack.c.l.b16 %v813
      %v853 = vunpack.c.l.b16 %v814
      %v854 = vunpack.c.l.b16 %v815
      %v855 = vunpack.c.l.b16 %v816
      %v856 = vunpack.c.l.b16 %v817
      %v857 = vunpack.c.l.b16 %v818
      %v858 = vunpack.c.l.b16 %v819
      %v859 = vunpack.c.l.b16 %v820
      %v860 = vunpack.c.l.b16 %v821
      %v861 = vunpack.c.l.b16 %v822
      %v862 = vunpack.c.l.b16 %v823
      %v863 = vunpack.c.l.b16 %v824
      %v864 = vunpack.c.l.b16 %v825
      %v865 = vunpack.c.l.b16 %v826
      %v866 = vunpack.c.l.b16 %v827
      %v867 = vpack.c.b16 %v852, %v851
      %v868 = vpack.c.b16 %v854, %v853
      %v869 = vpack.c.b16 %v856, %v855
      %v870 = vpack.c.b16 %v858, %v857
      %v871 = vpack.c.b16 %v860, %v859
      %v872 = vpack.c.b16 %v862, %v861
      %v873 = vpack.c.b16 %v864, %v863
      %v874 = vpack.c.b16 %v866, %v865
      %883 = vmatprep.subr.bf16.mxu0 0
      %884 = vmatpush1.bf16.msra.mxu0 %v867
      %885 = vmatprep.subr.bf16.mxu0 0
      %886 = vmatpush1.bf16.msra.mxu0 %v868
      %887 = vmatprep.subr.bf16.mxu0 0
      %888 = vmatpush1.bf16.msra.mxu0 %v869
      %889 = vmatprep.subr.bf16.mxu0 0
      %890 = vmatpush1.bf16.msra.mxu0 %v870
      %891 = vmatprep.subr.bf16.mxu0 0
      %892 = vmatpush1.bf16.msra.mxu0 %v871
      %893 = vmatprep.subr.bf16.mxu0 0
      %894 = vmatpush1.bf16.msra.mxu0 %v872
      %895 = vmatprep.subr.bf16.mxu0 0
      %896 = vmatpush1.bf16.msra.mxu0 %v873
      %897 = vmatprep.subr.bf16.mxu0 0
      %898 = vmatpush1.bf16.msra.mxu0 %v874
      %899 = vmatprep.subr.bf16.mxu0 0
      %900 = vmatpush1.bf16.msra.mxu0 0
      %901 = vmatprep.subr.bf16.mxu0 0
      %902 = vmatpush1.bf16.msra.mxu0 0
      %903 = vmatprep.subr.bf16.mxu0 0
      %904 = vmatpush1.bf16.msra.mxu0 0
      %905 = vmatprep.subr.bf16.mxu0 0
      %906 = vmatpush1.bf16.msra.mxu0 0
      %907 = vmatprep.subr.bf16.mxu0 0
      %908 = vmatpush1.bf16.msra.mxu0 0
      %909 = vmatprep.subr.bf16.mxu0 0
      %910 = vmatpush1.bf16.msra.mxu0 0
      %911 = vmatprep.subr.bf16.mxu0 0
      %912 = vmatpush1.bf16.msra.mxu0 0
      %913 = vmatprep.subr.bf16.mxu0 0
      %914 = vmatpush1.bf16.msra.mxu0 0
      %915 = vmatprep.mubr.bf16.mxu0 0
      %916 = vmatmul.mubr.bf16.gmra.mrb[0].mxu0 %v810
      %v917 = vpop.f32.mrb[0].mxu0
      %v918 = vadd.f32 %v833, %v917
      %v919 = vpop.f32.mrb[0].mxu0
      %v920 = vpop.f32.mrb[0].mxu0
      %v921 = vadd.f32 %v833, %v920
      %v922 = vpop.f32.mrb[0].mxu0
      %923 = vmatprep.mubr.bf16.mxu0 0
      %924 = vmatmul.mubr.bf16.gmra.mrb[0].mxu0 %v811
      %v925 = vpop.f32.mrb[0].mxu0
      %v926 = vadd.f32 %v833, %v925
      %v927 = vpop.f32.mrb[0].mxu0
      %v928 = vpop.f32.mrb[0].mxu0
      %v929 = vadd.f32 %v833, %v928
      %v930 = vpop.f32.mrb[0].mxu0
      %931 = vdwg.mxu0
      %v932 = vadd.f32 %v918, %v145
      %v933 = vadd.f32 %v921, %v146
      %v934 = vadd.f32 %v926, %v147
      %v935 = vadd.f32 %v929, %v148
      %v936 = vpack.c.bf16 %v933, %v932
      %v937 = vpack.c.bf16 %v935, %v934
      %v940 = vunpack.c.l.b16 %v936
      %v941 = vunpack.c.h.b16 %v936
      %v942 = vunpack.c.l.b16 %v937
      %v943 = vunpack.c.h.b16 %v937
      %v944 = vpack.c.b16 %v940, %v940
      %v945 = vpack.c.b16 %v941, %v941
      %v946 = vpack.c.b16 %v942, %v942
      %v947 = vpack.c.b16 %v943, %v943
      %952 = vst [vmem:[#allocation15] sm:$0xf] %v944
      %953 = vst [vmem:[#allocation15 + $0x4] sm:$0xf] %v945
      %954 = vst [vmem:[#allocation15 + $0x8] sm:$0xf] %v946
      %955 = vst [vmem:[#allocation15 + $0xc] sm:$0xf] %v947
      %v956 = vld [vmem:[%s8] sm:$0x1]
      %v957 = vld [vmem:[%s9] sm:$0x1]
      %958 = vadd.xlane.f32.xlu0 %v932
      %v959 = vpop.xlane.xlu0 %958
      %960 = vadd.xlane.f32.xlu0 %v933
      %v961 = vpop.xlane.xlu0 %960
      %962 = vadd.xlane.f32.xlu0 %v934
      %v963 = vpop.xlane.xlu0 %962
      %964 = vadd.xlane.f32.xlu0 %v935
      %v965 = vpop.xlane.xlu0 %964
      %v966 = vmul.f32 %v959, %v159
      %v967 = vmul.f32 %v961, %v159
      %v968 = vmul.f32 %v963, %v159
      %v969 = vmul.f32 %v965, %v159
      %v970 = vsub.f32 %v932, %v966
      %v971 = vsub.f32 %v933, %v967
      %v972 = vsub.f32 %v934, %v968
      %v973 = vsub.f32 %v935, %v969
      %v974 = vmul.f32 %v970, %v970
      %v975 = vmul.f32 %v971, %v971
      %v976 = vmul.f32 %v972, %v972
      %v977 = vmul.f32 %v973, %v973
      %978 = vadd.xlane.f32.xlu0 %v974
      %v979 = vpop.xlane.xlu0 %978
      %980 = vadd.xlane.f32.xlu0 %v975
      %v981 = vpop.xlane.xlu0 %980
      %982 = vadd.xlane.f32.xlu0 %v976
      %v983 = vpop.xlane.xlu0 %982
      %984 = vadd.xlane.f32.xlu0 %v977
      %v985 = vpop.xlane.xlu0 %984
      %v986 = vmul.f32 %v979, %v159
      %v987 = vmul.f32 %v981, %v159
      %v988 = vmul.f32 %v983, %v159
      %v989 = vmul.f32 %v985, %v159
      %v990 = vadd.f32 %v986, 1e-05
      %v991 = vadd.f32 %v987, 1e-05
      %v992 = vadd.f32 %v988, 1e-05
      %v993 = vadd.f32 %v989, 1e-05
      %v994 = vrsqrt.pop %v990
      %v995 = vrsqrt.pop %v991
      %v996 = vrsqrt.pop %v992
      %v997 = vrsqrt.pop %v993
      %v998 = vmul.f32 %v970, %v994
      %v999 = vmul.f32 %v971, %v995
      %v1000 = vmul.f32 %v972, %v996
      %v1001 = vmul.f32 %v973, %v997
      %v1003 = vlaneseq
      %v1004 = vshrl.u32 %v1003, 7
      %v1005 = vsub.s32 0, %v1004
      %v1006 = vrot.slane %v956, %v1005
      %v1008 = vmul.f32 %v998, %v1006
      %v1009 = vmul.f32 %v999, %v1006
      %v1010 = vmul.f32 %v1000, %v1006
      %v1011 = vmul.f32 %v1001, %v1006
      %v1013 = vlaneseq
      %v1014 = vshrl.u32 %v1013, 7
      %v1015 = vsub.s32 0, %v1014
      %v1016 = vrot.slane %v957, %v1015
      %v1018 = vadd.f32 %v1008, %v1016
      %v1019 = vadd.f32 %v1009, %v1016
      %v1020 = vadd.f32 %v1010, %v1016
      %v1021 = vadd.f32 %v1011, %v1016
      %v1022 = vpack.c.bf16 %v1019, %v1018
      %v1023 = vpack.c.bf16 %v1021, %v1020
      %1024 = vst [vmem:[#allocation2] sm:$0xff] %v1022
      %1025 = vst [vmem:[#allocation2 + $0x8] sm:$0xff] %v1023
      %1026 = vst [vmem:[#allocation3] sm:$0xff] 0.0
      %1027 = vst [vmem:[#allocation3 + $0x8] sm:$0xff] 0.0
      %1028 = vst [vmem:[#allocation3 + $0x10] sm:$0xff] 0.0
      %1029 = vst [vmem:[#allocation3 + $0x18] sm:$0xff] 0.0
    $region93: #{tpu_custom_call.1} parent=1 // pred_fallthru
      _
    %v1030 = vld [vmem:[#allocation2] sm:$0xff]
    %v1031 = vld [vmem:[#allocation2 + $0x8] sm:$0xff]
    %v1032 = vld [vmem:[#allocation10] sm:$0xff]
    %v1033 = vld [vmem:[#allocation10 + $0x8] sm:$0xff]
    %v1034 = vld [vmem:[#allocation10 + $0x10] sm:$0xff]
    %v1035 = vld [vmem:[#allocation10 + $0x18] sm:$0xff]
    %v1036 = vld [vmem:[#allocation10 + $0x20] sm:$0xff]
    %v1037 = vld [vmem:[#allocation10 + $0x28] sm:$0xff]
    %v1038 = vld [vmem:[#allocation10 + $0x30] sm:$0xff]
    %v1039 = vld [vmem:[#allocation10 + $0x38] sm:$0xff]
    %v1040 = vld [vmem:[#allocation10 + $0x40] sm:$0xff]
    %v1041 = vld [vmem:[#allocation10 + $0x48] sm:$0xff]
    %v1042 = vld [vmem:[#allocation10 + $0x50] sm:$0xff]
    %v1043 = vld [vmem:[#allocation10 + $0x58] sm:$0xff]
    %v1044 = vld [vmem:[#allocation10 + $0x60] sm:$0xff]
    %v1045 = vld [vmem:[#allocation10 + $0x68] sm:$0xff]
    %v1046 = vld [vmem:[#allocation10 + $0x70] sm:$0xff]
    %v1047 = vld [vmem:[#allocation10 + $0x78] sm:$0xff]
    %v1048 = vld [vmem:[#allocation10 + $0x80] sm:$0xff]
    %v1049 = vld [vmem:[#allocation10 + $0x88] sm:$0xff]
    %v1050 = vld [vmem:[#allocation10 + $0x90] sm:$0xff]
    %v1051 = vld [vmem:[#allocation10 + $0x98] sm:$0xff]
    %v1052 = vld [vmem:[#allocation10 + $0xa0] sm:$0xff]
    %v1053 = vld [vmem:[#allocation10 + $0xa8] sm:$0xff]
    %v1054 = vld [vmem:[#allocation10 + $0xb0] sm:$0xff]
    %v1055 = vld [vmem:[#allocation10 + $0xb8] sm:$0xff]
    %v1056 = vld [vmem:[#allocation10 + $0xc0] sm:$0xff]
    %v1057 = vld [vmem:[#allocation10 + $0xc8] sm:$0xff]
    %v1058 = vld [vmem:[#allocation10 + $0xd0] sm:$0xff]
    %v1059 = vld [vmem:[#allocation10 + $0xd8] sm:$0xff]
    %v1060 = vld [vmem:[#allocation10 + $0xe0] sm:$0xff]
    %v1061 = vld [vmem:[#allocation10 + $0xe8] sm:$0xff]
    %v1062 = vld [vmem:[#allocation10 + $0xf0] sm:$0xff]
    %v1063 = vld [vmem:[#allocation10 + $0xf8] sm:$0xff]
    %v1064 = vld [vmem:[%s11] sm:$0xf]
    %v1066 = vlaneseq
    %v1067 = vshrl.u32 %v1066, 7
    %v1068 = vsub.s32 0, %v1067
    %v1069 = vrot.slane %v1064, %v1068
    %v1070 = vlaneseq
    %v1071 = vshrl.u32 %v1070, 7
    %v1072 = vsub.s32 1, %v1071
    %v1073 = vrot.slane %v1064, %v1072
    %v1074 = vlaneseq
    %v1075 = vshrl.u32 %v1074, 7
    %v1076 = vsub.s32 2, %v1075
    %v1077 = vrot.slane %v1064, %v1076
    %v1078 = vlaneseq
    %v1079 = vshrl.u32 %v1078, 7
    %v1080 = vsub.s32 3, %v1079
    %v1081 = vrot.slane %v1064, %v1080
    %v1118 = vunpack.c.l.b16 %v1032
    %v1119 = vunpack.c.h.b16 %v1032
    %v1120 = vunpack.c.l.b16 %v1033
    %v1121 = vunpack.c.h.b16 %v1033
    %v1122 = vunpack.c.l.b16 %v1034
    %v1123 = vunpack.c.h.b16 %v1034
    %v1124 = vunpack.c.l.b16 %v1035
    %v1125 = vunpack.c.h.b16 %v1035
    %v1126 = vunpack.c.l.b16 %v1036
    %v1127 = vunpack.c.h.b16 %v1036
    %v1128 = vunpack.c.l.b16 %v1037
    %v1129 = vunpack.c.h.b16 %v1037
    %v1130 = vunpack.c.l.b16 %v1038
    %v1131 = vunpack.c.h.b16 %v1038
    %v1132 = vunpack.c.l.b16 %v1039
    %v1133 = vunpack.c.h.b16 %v1039
    %v1134 = vunpack.c.l.b16 %v1040
    %v1135 = vunpack.c.h.b16 %v1040
    %v1136 = vunpack.c.l.b16 %v1041
    %v1137 = vunpack.c.h.b16 %v1041
    %v1138 = vunpack.c.l.b16 %v1042
    %v1139 = vunpack.c.h.b16 %v1042
    %v1140 = vunpack.c.l.b16 %v1043
    %v1141 = vunpack.c.h.b16 %v1043
    %v1142 = vunpack.c.l.b16 %v1044
    %v1143 = vunpack.c.h.b16 %v1044
    %v1144 = vunpack.c.l.b16 %v1045
    %v1145 = vunpack.c.h.b16 %v1045
    %v1146 = vunpack.c.l.b16 %v1046
    %v1147 = vunpack.c.h.b16 %v1046
    %v1148 = vunpack.c.l.b16 %v1047
    %v1149 = vunpack.c.h.b16 %v1047
    %v1150 = vunpack.c.l.b16 %v1048
    %v1151 = vunpack.c.h.b16 %v1048
    %v1152 = vunpack.c.l.b16 %v1049
    %v1153 = vunpack.c.h.b16 %v1049
    %v1154 = vunpack.c.l.b16 %v1050
    %v1155 = vunpack.c.h.b16 %v1050
    %v1156 = vunpack.c.l.b16 %v1051
    %v1157 = vunpack.c.h.b16 %v1051
    %v1158 = vunpack.c.l.b16 %v1052
    %v1159 = vunpack.c.h.b16 %v1052
    %v1160 = vunpack.c.l.b16 %v1053
    %v1161 = vunpack.c.h.b16 %v1053
    %v1162 = vunpack.c.l.b16 %v1054
    %v1163 = vunpack.c.h.b16 %v1054
    %v1164 = vunpack.c.l.b16 %v1055
    %v1165 = vunpack.c.h.b16 %v1055
    %v1166 = vunpack.c.l.b16 %v1056
    %v1167 = vunpack.c.h.b16 %v1056
    %v1168 = vunpack.c.l.b16 %v1057
    %v1169 = vunpack.c.h.b16 %v1057
    %v1170 = vunpack.c.l.b16 %v1058
    %v1171 = vunpack.c.h.b16 %v1058
    %v1172 = vunpack.c.l.b16 %v1059
    %v1173 = vunpack.c.h.b16 %v1059
    %v1174 = vunpack.c.l.b16 %v1060
    %v1175 = vunpack.c.h.b16 %v1060
    %v1176 = vunpack.c.l.b16 %v1061
    %v1177 = vunpack.c.h.b16 %v1061
    %v1178 = vunpack.c.l.b16 %v1062
    %v1179 = vunpack.c.h.b16 %v1062
    %v1180 = vunpack.c.l.b16 %v1063
    %v1181 = vunpack.c.h.b16 %v1063
    %v1182 = vpack.c.b16 %v1122, %v1118
    %v1183 = vpack.c.b16 %v1123, %v1119
    %v1184 = vpack.c.b16 %v1124, %v1120
    %v1185 = vpack.c.b16 %v1125, %v1121
    %v1186 = vpack.c.b16 %v1130, %v1126
    %v1187 = vpack.c.b16 %v1131, %v1127
    %v1188 = vpack.c.b16 %v1132, %v1128
    %v1189 = vpack.c.b16 %v1133, %v1129
    %v1190 = vpack.c.b16 %v1138, %v1134
    %v1191 = vpack.c.b16 %v1139, %v1135
    %v1192 = vpack.c.b16 %v1140, %v1136
    %v1193 = vpack.c.b16 %v1141, %v1137
    %v1194 = vpack.c.b16 %v1146, %v1142
    %v1195 = vpack.c.b16 %v1147, %v1143
    %v1196 = vpack.c.b16 %v1148, %v1144
    %v1197 = vpack.c.b16 %v1149, %v1145
    %v1198 = vpack.c.b16 %v1154, %v1150
    %v1199 = vpack.c.b16 %v1155, %v1151
    %v1200 = vpack.c.b16 %v1156, %v1152
    %v1201 = vpack.c.b16 %v1157, %v1153
    %v1202 = vpack.c.b16 %v1162, %v1158
    %v1203 = vpack.c.b16 %v1163, %v1159
    %v1204 = vpack.c.b16 %v1164, %v1160
    %v1205 = vpack.c.b16 %v1165, %v1161
    %v1206 = vpack.c.b16 %v1170, %v1166
    %v1207 = vpack.c.b16 %v1171, %v1167
    %v1208 = vpack.c.b16 %v1172, %v1168
    %v1209 = vpack.c.b16 %v1173, %v1169
    %v1210 = vpack.c.b16 %v1178, %v1174
    %v1211 = vpack.c.b16 %v1179, %v1175
    %v1212 = vpack.c.b16 %v1180, %v1176
    %v1213 = vpack.c.b16 %v1181, %v1177
    %1246 = vmatprep.subr.bf16.mxu0 %v1183
    %1247 = vmatpush1.bf16.msra.mxu0 %v1182
    %1248 = vmatprep.subr.bf16.mxu0 %v1187
    %1249 = vmatpush1.bf16.msra.mxu0 %v1186
    %1250 = vmatprep.subr.bf16.mxu0 %v1191
    %1251 = vmatpush1.bf16.msra.mxu0 %v1190
    %1252 = vmatprep.subr.bf16.mxu0 %v1195
    %1253 = vmatpush1.bf16.msra.mxu0 %v1194
    %1254 = vmatprep.subr.bf16.mxu0 %v1199
    %1255 = vmatpush1.bf16.msra.mxu0 %v1198
    %1256 = vmatprep.subr.bf16.mxu0 %v1203
    %1257 = vmatpush1.bf16.msra.mxu0 %v1202
    %1258 = vmatprep.subr.bf16.mxu0 %v1207
    %1259 = vmatpush1.bf16.msra.mxu0 %v1206
    %1260 = vmatprep.subr.bf16.mxu0 %v1211
    %1261 = vmatpush1.bf16.msra.mxu0 %v1210
    %1262 = vmatprep.subr.bf16.mxu0 0
    %1263 = vmatpush1.bf16.msra.mxu0 0
    %1264 = vmatprep.subr.bf16.mxu0 0
    %1265 = vmatpush1.bf16.msra.mxu0 0
    %1266 = vmatprep.subr.bf16.mxu0 0
    %1267 = vmatpush1.bf16.msra.mxu0 0
    %1268 = vmatprep.subr.bf16.mxu0 0
    %1269 = vmatpush1.bf16.msra.mxu0 0
    %1270 = vmatprep.subr.bf16.mxu0 0
    %1271 = vmatpush1.bf16.msra.mxu0 0
    %1272 = vmatprep.subr.bf16.mxu0 0
    %1273 = vmatpush1.bf16.msra.mxu0 0
    %1274 = vmatprep.subr.bf16.mxu0 0
    %1275 = vmatpush1.bf16.msra.mxu0 0
    %1276 = vmatprep.subr.bf16.mxu0 0
    %1277 = vmatpush1.bf16.msra.mxu0 0
    %1278 = vmatprep.mubr.bf16.mxu0 0
    %1279 = vmatmul.mubr.bf16.gmra.mrb[0].mxu0 %v1030
    %v1280 = vpop.f32.mrb[0].mxu0
    %v1281 = vadd.f32 %v1069, %v1280
    %v1282 = vpop.f32.mrb[0].mxu0
    %v1283 = vadd.f32 %v1073, %v1282
    %v1284 = vpop.f32.mrb[0].mxu0
    %v1285 = vadd.f32 %v1069, %v1284
    %v1286 = vpop.f32.mrb[0].mxu0
    %v1287 = vadd.f32 %v1073, %v1286
    %1288 = vmatprep.mubr.bf16.mxu0 0
    %1289 = vmatmul.mubr.bf16.gmra.mrb[0].mxu0 %v1031
    %v1290 = vpop.f32.mrb[0].mxu0
    %v1291 = vadd.f32 %v1069, %v1290
    %v1292 = vpop.f32.mrb[0].mxu0
    %v1293 = vadd.f32 %v1073, %v1292
    %v1294 = vpop.f32.mrb[0].mxu0
    %v1295 = vadd.f32 %v1069, %v1294
    %v1296 = vpop.f32.mrb[0].mxu0
    %v1297 = vadd.f32 %v1073, %v1296
    %1298 = vdwg.mxu0
    %1299 = vmatprep.subr.bf16.mxu0 %v1185
    %1300 = vmatpush1.bf16.msra.mxu0 %v1184
    %1301 = vmatprep.subr.bf16.mxu0 %v1189
    %1302 = vmatpush1.bf16.msra.mxu0 %v1188
    %1303 = vmatprep.subr.bf16.mxu0 %v1193
    %1304 = vmatpush1.bf16.msra.mxu0 %v1192
    %1305 = vmatprep.subr.bf16.mxu0 %v1197
    %1306 = vmatpush1.bf16.msra.mxu0 %v1196
    %1307 = vmatprep.subr.bf16.mxu0 %v1201
    %1308 = vmatpush1.bf16.msra.mxu0 %v1200
    %1309 = vmatprep.subr.bf16.mxu0 %v1205
    %1310 = vmatpush1.bf16.msra.mxu0 %v1204
    %1311 = vmatprep.subr.bf16.mxu0 %v1209
    %1312 = vmatpush1.bf16.msra.mxu0 %v1208
    %1313 = vmatprep.subr.bf16.mxu0 %v1213
    %1314 = vmatpush1.bf16.msra.mxu0 %v1212
    %1315 = vmatprep.subr.bf16.mxu0 0
    %1316 = vmatpush1.bf16.msra.mxu0 0
    %1317 = vmatprep.subr.bf16.mxu0 0
    %1318 = vmatpush1.bf16.msra.mxu0 0
    %1319 = vmatprep.subr.bf16.mxu0 0
    %1320 = vmatpush1.bf16.msra.mxu0 0
    %1321 = vmatprep.subr.bf16.mxu0 0
    %1322 = vmatpush1.bf16.msra.mxu0 0
    %1323 = vmatprep.subr.bf16.mxu0 0
    %1324 = vmatpush1.bf16.msra.mxu0 0
    %1325 = vmatprep.subr.bf16.mxu0 0
    %1326 = vmatpush1.bf16.msra.mxu0 0
    %1327 = vmatprep.subr.bf16.mxu0 0
    %1328 = vmatpush1.bf16.msra.mxu0 0
    %1329 = vmatprep.subr.bf16.mxu0 0
    %1330 = vmatpush1.bf16.msra.mxu0 0
    %1331 = vmatprep.mubr.bf16.mxu0 0
    %1332 = vmatmul.mubr.bf16.gmra.mrb[0].mxu0 %v1030
    %v1333 = vpop.f32.mrb[0].mxu0
    %v1334 = vadd.f32 %v1077, %v1333
    %v1335 = vpop.f32.mrb[0].mxu0
    %v1336 = vadd.f32 %v1081, %v1335
    %v1337 = vpop.f32.mrb[0].mxu0
    %v1338 = vadd.f32 %v1077, %v1337
    %v1339 = vpop.f32.mrb[0].mxu0
    %v1340 = vadd.f32 %v1081, %v1339
    %1341 = vmatprep.mubr.bf16.mxu0 0
    %1342 = vmatmul.mubr.bf16.gmra.mrb[0].mxu0 %v1031
    %v1343 = vpop.f32.mrb[0].mxu0
    %v1344 = vadd.f32 %v1077, %v1343
    %v1345 = vpop.f32.mrb[0].mxu0
    %v1346 = vadd.f32 %v1081, %v1345
    %v1347 = vpop.f32.mrb[0].mxu0
    %v1348 = vadd.f32 %v1077, %v1347
    %v1349 = vpop.f32.mrb[0].mxu0
    %v1350 = vadd.f32 %v1081, %v1349
    %1351 = vdwg.mxu0
    %v1352 = vld [vmem:[#allocation12] sm:$0xff]
    %v1353 = vld [vmem:[#allocation12 + $0x8] sm:$0xff]
    %v1354 = vld [vmem:[#allocation12 + $0x10] sm:$0xff]
    %v1355 = vld [vmem:[#allocation12 + $0x18] sm:$0xff]
    %v1356 = vld [vmem:[#allocation12 + $0x20] sm:$0xff]
    %v1357 = vld [vmem:[#allocation12 + $0x28] sm:$0xff]
    %v1358 = vld [vmem:[#allocation12 + $0x30] sm:$0xff]
    %v1359 = vld [vmem:[#allocation12 + $0x38] sm:$0xff]
    %v1360 = vld [vmem:[#allocation12 + $0x40] sm:$0xff]
    %v1361 = vld [vmem:[#allocation12 + $0x48] sm:$0xff]
    %v1362 = vld [vmem:[#allocation12 + $0x50] sm:$0xff]
    %v1363 = vld [vmem:[#allocation12 + $0x58] sm:$0xff]
    %v1364 = vld [vmem:[#allocation12 + $0x60] sm:$0xff]
    %v1365 = vld [vmem:[#allocation12 + $0x68] sm:$0xff]
    %v1366 = vld [vmem:[#allocation12 + $0x70] sm:$0xff]
    %v1367 = vld [vmem:[#allocation12 + $0x78] sm:$0xff]
    %v1368 = vld [vmem:[#allocation12 + $0x80] sm:$0xff]
    %v1369 = vld [vmem:[#allocation12 + $0x88] sm:$0xff]
    %v1370 = vld [vmem:[#allocation12 + $0x90] sm:$0xff]
    %v1371 = vld [vmem:[#allocation12 + $0x98] sm:$0xff]
    %v1372 = vld [vmem:[#allocation12 + $0xa0] sm:$0xff]
    %v1373 = vld [vmem:[#allocation12 + $0xa8] sm:$0xff]
    %v1374 = vld [vmem:[#allocation12 + $0xb0] sm:$0xff]
    %v1375 = vld [vmem:[#allocation12 + $0xb8] sm:$0xff]
    %v1376 = vld [vmem:[#allocation12 + $0xc0] sm:$0xff]
    %v1377 = vld [vmem:[#allocation12 + $0xc8] sm:$0xff]
    %v1378 = vld [vmem:[#allocation12 + $0xd0] sm:$0xff]
    %v1379 = vld [vmem:[#allocation12 + $0xd8] sm:$0xff]
    %v1380 = vld [vmem:[#allocation12 + $0xe0] sm:$0xff]
    %v1381 = vld [vmem:[#allocation12 + $0xe8] sm:$0xff]
    %v1382 = vld [vmem:[#allocation12 + $0xf0] sm:$0xff]
    %v1383 = vld [vmem:[#allocation12 + $0xf8] sm:$0xff]
    %v1384 = vld [vmem:[%s13] sm:$0xf]
    %v1386 = vlaneseq
    %v1387 = vshrl.u32 %v1386, 7
    %v1388 = vsub.s32 0, %v1387
    %v1389 = vrot.slane %v1384, %v1388
    %v1390 = vlaneseq
    %v1391 = vshrl.u32 %v1390, 7
    %v1392 = vsub.s32 1, %v1391
    %v1393 = vrot.slane %v1384, %v1392
    %v1394 = vlaneseq
    %v1395 = vshrl.u32 %v1394, 7
    %v1396 = vsub.s32 2, %v1395
    %v1397 = vrot.slane %v1384, %v1396
    %v1398 = vlaneseq
    %v1399 = vshrl.u32 %v1398, 7
    %v1400 = vsub.s32 3, %v1399
    %v1401 = vrot.slane %v1384, %v1400
    %v1438 = vunpack.c.l.b16 %v1352
    %v1439 = vunpack.c.h.b16 %v1352
    %v1440 = vunpack.c.l.b16 %v1353
    %v1441 = vunpack.c.h.b16 %v1353
    %v1442 = vunpack.c.l.b16 %v1354
    %v1443 = vunpack.c.h.b16 %v1354
    %v1444 = vunpack.c.l.b16 %v1355
    %v1445 = vunpack.c.h.b16 %v1355
    %v1446 = vunpack.c.l.b16 %v1356
    %v1447 = vunpack.c.h.b16 %v1356
    %v1448 = vunpack.c.l.b16 %v1357
    %v1449 = vunpack.c.h.b16 %v1357
    %v1450 = vunpack.c.l.b16 %v1358
    %v1451 = vunpack.c.h.b16 %v1358
    %v1452 = vunpack.c.l.b16 %v1359
    %v1453 = vunpack.c.h.b16 %v1359
    %v1454 = vunpack.c.l.b16 %v1360
    %v1455 = vunpack.c.h.b16 %v1360
    %v1456 = vunpack.c.l.b16 %v1361
    %v1457 = vunpack.c.h.b16 %v1361
    %v1458 = vunpack.c.l.b16 %v1362
    %v1459 = vunpack.c.h.b16 %v1362
    %v1460 = vunpack.c.l.b16 %v1363
    %v1461 = vunpack.c.h.b16 %v1363
    %v1462 = vunpack.c.l.b16 %v1364
    %v1463 = vunpack.c.h.b16 %v1364
    %v1464 = vunpack.c.l.b16 %v1365
    %v1465 = vunpack.c.h.b16 %v1365
    %v1466 = vunpack.c.l.b16 %v1366
    %v1467 = vunpack.c.h.b16 %v1366
    %v1468 = vunpack.c.l.b16 %v1367
    %v1469 = vunpack.c.h.b16 %v1367
    %v1470 = vunpack.c.l.b16 %v1368
    %v1471 = vunpack.c.h.b16 %v1368
    %v1472 = vunpack.c.l.b16 %v1369
    %v1473 = vunpack.c.h.b16 %v1369
    %v1474 = vunpack.c.l.b16 %v1370
    %v1475 = vunpack.c.h.b16 %v1370
    %v1476 = vunpack.c.l.b16 %v1371
    %v1477 = vunpack.c.h.b16 %v1371
    %v1478 = vunpack.c.l.b16 %v1372
    %v1479 = vunpack.c.h.b16 %v1372
    %v1480 = vunpack.c.l.b16 %v1373
    %v1481 = vunpack.c.h.b16 %v1373
    %v1482 = vunpack.c.l.b16 %v1374
    %v1483 = vunpack.c.h.b16 %v1374
    %v1484 = vunpack.c.l.b16 %v1375
    %v1485 = vunpack.c.h.b16 %v1375
    %v1486 = vunpack.c.l.b16 %v1376
    %v1487 = vunpack.c.h.b16 %v1376
    %v1488 = vunpack.c.l.b16 %v1377
    %v1489 = vunpack.c.h.b16 %v1377
    %v1490 = vunpack.c.l.b16 %v1378
    %v1491 = vunpack.c.h.b16 %v1378
    %v1492 = vunpack.c.l.b16 %v1379
    %v1493 = vunpack.c.h.b16 %v1379
    %v1494 = vunpack.c.l.b16 %v1380
    %v1495 = vunpack.c.h.b16 %v1380
    %v1496 = vunpack.c.l.b16 %v1381
    %v1497 = vunpack.c.h.b16 %v1381
    %v1498 = vunpack.c.l.b16 %v1382
    %v1499 = vunpack.c.h.b16 %v1382
    %v1500 = vunpack.c.l.b16 %v1383
    %v1501 = vunpack.c.h.b16 %v1383
    %v1502 = vpack.c.b16 %v1442, %v1438
    %v1503 = vpack.c.b16 %v1443, %v1439
    %v1504 = vpack.c.b16 %v1444, %v1440
    %v1505 = vpack.c.b16 %v1445, %v1441
    %v1506 = vpack.c.b16 %v1450, %v1446
    %v1507 = vpack.c.b16 %v1451, %v1447
    %v1508 = vpack.c.b16 %v1452, %v1448
    %v1509 = vpack.c.b16 %v1453, %v1449
    %v1510 = vpack.c.b16 %v1458, %v1454
    %v1511 = vpack.c.b16 %v1459, %v1455
    %v1512 = vpack.c.b16 %v1460, %v1456
    %v1513 = vpack.c.b16 %v1461, %v1457
    %v1514 = vpack.c.b16 %v1466, %v1462
    %v1515 = vpack.c.b16 %v1467, %v1463
    %v1516 = vpack.c.b16 %v1468, %v1464
    %v1517 = vpack.c.b16 %v1469, %v1465
    %v1518 = vpack.c.b16 %v1474, %v1470
    %v1519 = vpack.c.b16 %v1475, %v1471
    %v1520 = vpack.c.b16 %v1476, %v1472
    %v1521 = vpack.c.b16 %v1477, %v1473
    %v1522 = vpack.c.b16 %v1482, %v1478
    %v1523 = vpack.c.b16 %v1483, %v1479
    %v1524 = vpack.c.b16 %v1484, %v1480
    %v1525 = vpack.c.b16 %v1485, %v1481
    %v1526 = vpack.c.b16 %v1490, %v1486
    %v1527 = vpack.c.b16 %v1491, %v1487
    %v1528 = vpack.c.b16 %v1492, %v1488
    %v1529 = vpack.c.b16 %v1493, %v1489
    %v1530 = vpack.c.b16 %v1498, %v1494
    %v1531 = vpack.c.b16 %v1499, %v1495
    %v1532 = vpack.c.b16 %v1500, %v1496
    %v1533 = vpack.c.b16 %v1501, %v1497
    %1566 = vmatprep.subr.bf16.mxu0 %v1503
    %1567 = vmatpush1.bf16.msra.mxu0 %v1502
    %1568 = vmatprep.subr.bf16.mxu0 %v1507
    %1569 = vmatpush1.bf16.msra.mxu0 %v1506
    %1570 = vmatprep.subr.bf16.mxu0 %v1511
    %1571 = vmatpush1.bf16.msra.mxu0 %v1510
    %1572 = vmatprep.subr.bf16.mxu0 %v1515
    %1573 = vmatpush1.bf16.msra.mxu0 %v1514
    %1574 = vmatprep.subr.bf16.mxu0 %v1519
    %1575 = vmatpush1.bf16.msra.mxu0 %v1518
    %1576 = vmatprep.subr.bf16.mxu0 %v1523
    %1577 = vmatpush1.bf16.msra.mxu0 %v1522
    %1578 = vmatprep.subr.bf16.mxu0 %v1527
    %1579 = vmatpush1.bf16.msra.mxu0 %v1526
    %1580 = vmatprep.subr.bf16.mxu0 %v1531
    %1581 = vmatpush1.bf16.msra.mxu0 %v1530
    %1582 = vmatprep.subr.bf16.mxu0 0
    %1583 = vmatpush1.bf16.msra.mxu0 0
    %1584 = vmatprep.subr.bf16.mxu0 0
    %1585 = vmatpush1.bf16.msra.mxu0 0
    %1586 = vmatprep.subr.bf16.mxu0 0
    %1587 = vmatpush1.bf16.msra.mxu0 0
    %1588 = vmatprep.subr.bf16.mxu0 0
    %1589 = vmatpush1.bf16.msra.mxu0 0
    %1590 = vmatprep.subr.bf16.mxu0 0
    %1591 = vmatpush1.bf16.msra.mxu0 0
    %1592 = vmatprep.subr.bf16.mxu0 0
    %1593 = vmatpush1.bf16.msra.mxu0 0
    %1594 = vmatprep.subr.bf16.mxu0 0
    %1595 = vmatpush1.bf16.msra.mxu0 0
    %1596 = vmatprep.subr.bf16.mxu0 0
    %1597 = vmatpush1.bf16.msra.mxu0 0
    %1598 = vmatprep.mubr.bf16.mxu0 0
    %1599 = vmatmul.mubr.bf16.gmra.mrb[0].mxu0 %v1030
    %v1600 = vpop.f32.mrb[0].mxu0
    %v1601 = vadd.f32 %v1389, %v1600
    %v1602 = vpop.f32.mrb[0].mxu0
    %v1603 = vadd.f32 %v1393, %v1602
    %v1604 = vpop.f32.mrb[0].mxu0
    %v1605 = vadd.f32 %v1389, %v1604
    %v1606 = vpop.f32.mrb[0].mxu0
    %v1607 = vadd.f32 %v1393, %v1606
    %1608 = vmatprep.mubr.bf16.mxu0 0
    %1609 = vmatmul.mubr.bf16.gmra.mrb[0].mxu0 %v1031
    %v1610 = vpop.f32.mrb[0].mxu0
    %v1611 = vadd.f32 %v1389, %v1610
    %v1612 = vpop.f32.mrb[0].mxu0
    %v1613 = vadd.f32 %v1393, %v1612
    %v1614 = vpop.f32.mrb[0].mxu0
    %v1615 = vadd.f32 %v1389, %v1614
    %v1616 = vpop.f32.mrb[0].mxu0
    %v1617 = vadd.f32 %v1393, %v1616
    %1618 = vdwg.mxu0
    %1619 = vmatprep.subr.bf16.mxu0 %v1505
    %1620 = vmatpush1.bf16.msra.mxu0 %v1504
    %1621 = vmatprep.subr.bf16.mxu0 %v1509
    %1622 = vmatpush1.bf16.msra.mxu0 %v1508
    %1623 = vmatprep.subr.bf16.mxu0 %v1513
    %1624 = vmatpush1.bf16.msra.mxu0 %v1512
    %1625 = vmatprep.subr.bf16.mxu0 %v1517
    %1626 = vmatpush1.bf16.msra.mxu0 %v1516
    %1627 = vmatprep.subr.bf16.mxu0 %v1521
    %1628 = vmatpush1.bf16.msra.mxu0 %v1520
    %1629 = vmatprep.subr.bf16.mxu0 %v1525
    %1630 = vmatpush1.bf16.msra.mxu0 %v1524
    %1631 = vmatprep.subr.bf16.mxu0 %v1529
    %1632 = vmatpush1.bf16.msra.mxu0 %v1528
    %1633 = vmatprep.subr.bf16.mxu0 %v1533
    %1634 = vmatpush1.bf16.msra.mxu0 %v1532
    %1635 = vmatprep.subr.bf16.mxu0 0
    %1636 = vmatpush1.bf16.msra.mxu0 0
    %1637 = vmatprep.subr.bf16.mxu0 0
    %1638 = vmatpush1.bf16.msra.mxu0 0
    %1639 = vmatprep.subr.bf16.mxu0 0
    %1640 = vmatpush1.bf16.msra.mxu0 0
    %1641 = vmatprep.subr.bf16.mxu0 0
    %1642 = vmatpush1.bf16.msra.mxu0 0
    %1643 = vmatprep.subr.bf16.mxu0 0
    %1644 = vmatpush1.bf16.msra.mxu0 0
    %1645 = vmatprep.subr.bf16.mxu0 0
    %1646 = vmatpush1.bf16.msra.mxu0 0
    %1647 = vmatprep.subr.bf16.mxu0 0
    %1648 = vmatpush1.bf16.msra.mxu0 0
    %1649 = vmatprep.subr.bf16.mxu0 0
    %1650 = vmatpush1.bf16.msra.mxu0 0
    %1651 = vmatprep.mubr.bf16.mxu0 0
    %1652 = vmatmul.mubr.bf16.gmra.mrb[0].mxu0 %v1030
    %v1653 = vpop.f32.mrb[0].mxu0
    %v1654 = vadd.f32 %v1397, %v1653
    %v1655 = vpop.f32.mrb[0].mxu0
    %v1656 = vadd.f32 %v1401, %v1655
    %v1657 = vpop.f32.mrb[0].mxu0
    %v1658 = vadd.f32 %v1397, %v1657
    %v1659 = vpop.f32.mrb[0].mxu0
    %v1660 = vadd.f32 %v1401, %v1659
    %1661 = vmatprep.mubr.bf16.mxu0 0
    %1662 = vmatmul.mubr.bf16.gmra.mrb[0].mxu0 %v1031
    %v1663 = vpop.f32.mrb[0].mxu0
    %v1664 = vadd.f32 %v1397, %v1663
    %v1665 = vpop.f32.mrb[0].mxu0
    %v1666 = vadd.f32 %v1401, %v1665
    %v1667 = vpop.f32.mrb[0].mxu0
    %v1668 = vadd.f32 %v1397, %v1667
    %v1669 = vpop.f32.mrb[0].mxu0
    %v1670 = vadd.f32 %v1401, %v1669
    %1671 = vdwg.mxu0
    %v1672 = vmul.f32 %v1601, 0.5
    %v1673 = vmul.f32 %v1603, 0.5
    %v1674 = vmul.f32 %v1654, 0.5
    %v1675 = vmul.f32 %v1656, 0.5
    %v1676 = vmul.f32 %v1605, 0.5
    %v1677 = vmul.f32 %v1607, 0.5
    %v1678 = vmul.f32 %v1658, 0.5
    %v1679 = vmul.f32 %v1660, 0.5
    %v1680 = vmul.f32 %v1611, 0.5
    %v1681 = vmul.f32 %v1613, 0.5
    %v1682 = vmul.f32 %v1664, 0.5
    %v1683 = vmul.f32 %v1666, 0.5
    %v1684 = vmul.f32 %v1615, 0.5
    %v1685 = vmul.f32 %v1617, 0.5
    %v1686 = vmul.f32 %v1668, 0.5
    %v1687 = vmul.f32 %v1670, 0.5
    %v1688 = vmul.f32 %v1601, 0.70710677
    %v1689 = vmul.f32 %v1603, 0.70710677
    %v1690 = vmul.f32 %v1654, 0.70710677
    %v1691 = vmul.f32 %v1656, 0.70710677
    %v1692 = vmul.f32 %v1605, 0.70710677
    %v1693 = vmul.f32 %v1607, 0.70710677
    %v1694 = vmul.f32 %v1658, 0.70710677
    %v1695 = vmul.f32 %v1660, 0.70710677
    %v1696 = vmul.f32 %v1611, 0.70710677
    %v1697 = vmul.f32 %v1613, 0.70710677
    %v1698 = vmul.f32 %v1664, 0.70710677
    %v1699 = vmul.f32 %v1666, 0.70710677
    %v1700 = vmul.f32 %v1615, 0.70710677
    %v1701 = vmul.f32 %v1617, 0.70710677
    %v1702 = vmul.f32 %v1668, 0.70710677
    %v1703 = vmul.f32 %v1670, 0.70710677
    %v1704 = verf.f32.pop %v1688
    %v1705 = verf.f32.pop %v1689
    %v1706 = verf.f32.pop %v1690
    %v1707 = verf.f32.pop %v1691
    %v1708 = verf.f32.pop %v1692
    %v1709 = verf.f32.pop %v1693
    %v1710 = verf.f32.pop %v1694
    %v1711 = verf.f32.pop %v1695
    %v1712 = verf.f32.pop %v1696
    %v1713 = verf.f32.pop %v1697
    %v1714 = verf.f32.pop %v1698
    %v1715 = verf.f32.pop %v1699
    %v1716 = verf.f32.pop %v1700
    %v1717 = verf.f32.pop %v1701
    %v1718 = verf.f32.pop %v1702
    %v1719 = verf.f32.pop %v1703
    %v1720 = vadd.f32 %v1704, 1.0
    %v1721 = vadd.f32 %v1705, 1.0
    %v1722 = vadd.f32 %v1706, 1.0
    %v1723 = vadd.f32 %v1707, 1.0
    %v1724 = vadd.f32 %v1708, 1.0
    %v1725 = vadd.f32 %v1709, 1.0
    %v1726 = vadd.f32 %v1710, 1.0
    %v1727 = vadd.f32 %v1711, 1.0
    %v1728 = vadd.f32 %v1712, 1.0
    %v1729 = vadd.f32 %v1713, 1.0
    %v1730 = vadd.f32 %v1714, 1.0
    %v1731 = vadd.f32 %v1715, 1.0
    %v1732 = vadd.f32 %v1716, 1.0
    %v1733 = vadd.f32 %v1717, 1.0
    %v1734 = vadd.f32 %v1718, 1.0
    %v1735 = vadd.f32 %v1719, 1.0
    %v1736 = vmul.f32 %v1672, %v1720
    %v1737 = vmul.f32 %v1673, %v1721
    %v1738 = vmul.f32 %v1674, %v1722
    %v1739 = vmul.f32 %v1675, %v1723
    %v1740 = vmul.f32 %v1676, %v1724
    %v1741 = vmul.f32 %v1677, %v1725
    %v1742 = vmul.f32 %v1678, %v1726
    %v1743 = vmul.f32 %v1679, %v1727
    %v1744 = vmul.f32 %v1680, %v1728
    %v1745 = vmul.f32 %v1681, %v1729
    %v1746 = vmul.f32 %v1682, %v1730
    %v1747 = vmul.f32 %v1683, %v1731
    %v1748 = vmul.f32 %v1684, %v1732
    %v1749 = vmul.f32 %v1685, %v1733
    %v1750 = vmul.f32 %v1686, %v1734
    %v1751 = vmul.f32 %v1687, %v1735
    %v1752 = vmul.f32 %v1281, %v1736
    %v1753 = vmul.f32 %v1283, %v1737
    %v1754 = vmul.f32 %v1334, %v1738
    %v1755 = vmul.f32 %v1336, %v1739
    %v1756 = vmul.f32 %v1285, %v1740
    %v1757 = vmul.f32 %v1287, %v1741
    %v1758 = vmul.f32 %v1338, %v1742
    %v1759 = vmul.f32 %v1340, %v1743
    %v1760 = vmul.f32 %v1291, %v1744
    %v1761 = vmul.f32 %v1293, %v1745
    %v1762 = vmul.f32 %v1344, %v1746
    %v1763 = vmul.f32 %v1346, %v1747
    %v1764 = vmul.f32 %v1295, %v1748
    %v1765 = vmul.f32 %v1297, %v1749
    %v1766 = vmul.f32 %v1348, %v1750
    %v1767 = vmul.f32 %v1350, %v1751
    %v1768 = vpack.c.bf16 %v1756, %v1752
    %v1769 = vpack.c.bf16 %v1757, %v1753
    %v1770 = vpack.c.bf16 %v1758, %v1754
    %v1771 = vpack.c.bf16 %v1759, %v1755
    %v1772 = vpack.c.bf16 %v1764, %v1760
    %v1773 = vpack.c.bf16 %v1765, %v1761
    %v1774 = vpack.c.bf16 %v1766, %v1762
    %v1775 = vpack.c.bf16 %v1767, %v1763
    %v1776 = vld [vmem:[#allocation3] sm:$0xff]
    %v1777 = vld [vmem:[#allocation3 + $0x8] sm:$0xff]
    %v1778 = vld [vmem:[#allocation3 + $0x10] sm:$0xff]
    %v1779 = vld [vmem:[#allocation3 + $0x18] sm:$0xff]
    %v1780 = vld [vmem:[#allocation13] sm:$0xf]
    %v1781 = vld [vmem:[#allocation13 + $0x4] sm:$0xf]
    %v1782 = vld [vmem:[#allocation13 + $0x8] sm:$0xf]
    %v1783 = vld [vmem:[#allocation13 + $0xc] sm:$0xf]
    %v1784 = vld [vmem:[#allocation13 + $0x10] sm:$0xf]
    %v1785 = vld [vmem:[#allocation13 + $0x14] sm:$0xf]
    %v1786 = vld [vmem:[#allocation13 + $0x18] sm:$0xf]
    %v1787 = vld [vmem:[#allocation13 + $0x1c] sm:$0xf]
    %v1788 = vld [vmem:[#allocation13 + $0x20] sm:$0xf]
    %v1789 = vld [vmem:[#allocation13 + $0x24] sm:$0xf]
    %v1790 = vld [vmem:[#allocation13 + $0x28] sm:$0xf]
    %v1791 = vld [vmem:[#allocation13 + $0x2c] sm:$0xf]
    %v1792 = vld [vmem:[#allocation13 + $0x30] sm:$0xf]
    %v1793 = vld [vmem:[#allocation13 + $0x34] sm:$0xf]
    %v1794 = vld [vmem:[#allocation13 + $0x38] sm:$0xf]
    %v1795 = vld [vmem:[#allocation13 + $0x3c] sm:$0xf]
    %v1796 = vld [vmem:[#allocation13 + $0x40] sm:$0xf]
    %v1797 = vld [vmem:[#allocation13 + $0x44] sm:$0xf]
    %v1798 = vld [vmem:[#allocation13 + $0x48] sm:$0xf]
    %v1799 = vld [vmem:[#allocation13 + $0x4c] sm:$0xf]
    %v1800 = vld [vmem:[#allocation13 + $0x50] sm:$0xf]
    %v1801 = vld [vmem:[#allocation13 + $0x54] sm:$0xf]
    %v1802 = vld [vmem:[#allocation13 + $0x58] sm:$0xf]
    %v1803 = vld [vmem:[#allocation13 + $0x5c] sm:$0xf]
    %v1804 = vld [vmem:[#allocation13 + $0x60] sm:$0xf]
    %v1805 = vld [vmem:[#allocation13 + $0x64] sm:$0xf]
    %v1806 = vld [vmem:[#allocation13 + $0x68] sm:$0xf]
    %v1807 = vld [vmem:[#allocation13 + $0x6c] sm:$0xf]
    %v1808 = vld [vmem:[#allocation13 + $0x70] sm:$0xf]
    %v1809 = vld [vmem:[#allocation13 + $0x74] sm:$0xf]
    %v1810 = vld [vmem:[#allocation13 + $0x78] sm:$0xf]
    %v1811 = vld [vmem:[#allocation13 + $0x7c] sm:$0xf]
    %v1812 = vld [vmem:[#allocation13 + $0x80] sm:$0xf]
    %v1813 = vld [vmem:[#allocation13 + $0x84] sm:$0xf]
    %v1814 = vld [vmem:[#allocation13 + $0x88] sm:$0xf]
    %v1815 = vld [vmem:[#allocation13 + $0x8c] sm:$0xf]
    %v1816 = vld [vmem:[#allocation13 + $0x90] sm:$0xf]
    %v1817 = vld [vmem:[#allocation13 + $0x94] sm:$0xf]
    %v1818 = vld [vmem:[#allocation13 + $0x98] sm:$0xf]
    %v1819 = vld [vmem:[#allocation13 + $0x9c] sm:$0xf]
    %v1820 = vld [vmem:[#allocation13 + $0xa0] sm:$0xf]
    %v1821 = vld [vmem:[#allocation13 + $0xa4] sm:$0xf]
    %v1822 = vld [vmem:[#allocation13 + $0xa8] sm:$0xf]
    %v1823 = vld [vmem:[#allocation13 + $0xac] sm:$0xf]
    %v1824 = vld [vmem:[#allocation13 + $0xb0] sm:$0xf]
    %v1825 = vld [vmem:[#allocation13 + $0xb4] sm:$0xf]
    %v1826 = vld [vmem:[#allocation13 + $0xb8] sm:$0xf]
    %v1827 = vld [vmem:[#allocation13 + $0xbc] sm:$0xf]
    %v1828 = vld [vmem:[#allocation13 + $0xc0] sm:$0xf]
    %v1829 = vld [vmem:[#allocation13 + $0xc4] sm:$0xf]
    %v1830 = vld [vmem:[#allocation13 + $0xc8] sm:$0xf]
    %v1831 = vld [vmem:[#allocation13 + $0xcc] sm:$0xf]
    %v1832 = vld [vmem:[#allocation13 + $0xd0] sm:$0xf]
    %v1833 = vld [vmem:[#allocation13 + $0xd4] sm:$0xf]
    %v1834 = vld [vmem:[#allocation13 + $0xd8] sm:$0xf]
    %v1835 = vld [vmem:[#allocation13 + $0xdc] sm:$0xf]
    %v1836 = vld [vmem:[#allocation13 + $0xe0] sm:$0xf]
    %v1837 = vld [vmem:[#allocation13 + $0xe4] sm:$0xf]
    %v1838 = vld [vmem:[#allocation13 + $0xe8] sm:$0xf]
    %v1839 = vld [vmem:[#allocation13 + $0xec] sm:$0xf]
    %v1840 = vld [vmem:[#allocation13 + $0xf0] sm:$0xf]
    %v1841 = vld [vmem:[#allocation13 + $0xf4] sm:$0xf]
    %v1842 = vld [vmem:[#allocation13 + $0xf8] sm:$0xf]
    %v1843 = vld [vmem:[#allocation13 + $0xfc] sm:$0xf]
    %v1908 = vunpack.c.l.b16 %v1780
    %v1909 = vunpack.c.l.b16 %v1781
    %v1910 = vunpack.c.l.b16 %v1782
    %v1911 = vunpack.c.l.b16 %v1783
    %v1912 = vunpack.c.l.b16 %v1784
    %v1913 = vunpack.c.l.b16 %v1785
    %v1914 = vunpack.c.l.b16 %v1786
    %v1915 = vunpack.c.l.b16 %v1787
    %v1916 = vunpack.c.l.b16 %v1788
    %v1917 = vunpack.c.l.b16 %v1789
    %v1918 = vunpack.c.l.b16 %v1790
    %v1919 = vunpack.c.l.b16 %v1791
    %v1920 = vunpack.c.l.b16 %v1792
    %v1921 = vunpack.c.l.b16 %v1793
    %v1922 = vunpack.c.l.b16 %v1794
    %v1923 = vunpack.c.l.b16 %v1795
    %v1924 = vunpack.c.l.b16 %v1796
    %v1925 = vunpack.c.l.b16 %v1797
    %v1926 = vunpack.c.l.b16 %v1798
    %v1927 = vunpack.c.l.b16 %v1799
    %v1928 = vunpack.c.l.b16 %v1800
    %v1929 = vunpack.c.l.b16 %v1801
    %v1930 = vunpack.c.l.b16 %v1802
    %v1931 = vunpack.c.l.b16 %v1803
    %v1932 = vunpack.c.l.b16 %v1804
    %v1933 = vunpack.c.l.b16 %v1805
    %v1934 = vunpack.c.l.b16 %v1806
    %v1935 = vunpack.c.l.b16 %v1807
    %v1936 = vunpack.c.l.b16 %v1808
    %v1937 = vunpack.c.l.b16 %v1809
    %v1938 = vunpack.c.l.b16 %v1810
    %v1939 = vunpack.c.l.b16 %v1811
    %v1940 = vunpack.c.l.b16 %v1812
    %v1941 = vunpack.c.l.b16 %v1813
    %v1942 = vunpack.c.l.b16 %v1814
    %v1943 = vunpack.c.l.b16 %v1815
    %v1944 = vunpack.c.l.b16 %v1816
    %v1945 = vunpack.c.l.b16 %v1817
    %v1946 = vunpack.c.l.b16 %v1818
    %v1947 = vunpack.c.l.b16 %v1819
    %v1948 = vunpack.c.l.b16 %v1820
    %v1949 = vunpack.c.l.b16 %v1821
    %v1950 = vunpack.c.l.b16 %v1822
    %v1951 = vunpack.c.l.b16 %v1823
    %v1952 = vunpack.c.l.b16 %v1824
    %v1953 = vunpack.c.l.b16 %v1825
    %v1954 = vunpack.c.l.b16 %v1826
    %v1955 = vunpack.c.l.b16 %v1827
    %v1956 = vunpack.c.l.b16 %v1828
    %v1957 = vunpack.c.l.b16 %v1829
    %v1958 = vunpack.c.l.b16 %v1830
    %v1959 = vunpack.c.l.b16 %v1831
    %v1960 = vunpack.c.l.b16 %v1832
    %v1961 = vunpack.c.l.b16 %v1833
    %v1962 = vunpack.c.l.b16 %v1834
    %v1963 = vunpack.c.l.b16 %v1835
    %v1964 = vunpack.c.l.b16 %v1836
    %v1965 = vunpack.c.l.b16 %v1837
    %v1966 = vunpack.c.l.b16 %v1838
    %v1967 = vunpack.c.l.b16 %v1839
    %v1968 = vunpack.c.l.b16 %v1840
    %v1969 = vunpack.c.l.b16 %v1841
    %v1970 = vunpack.c.l.b16 %v1842
    %v1971 = vunpack.c.l.b16 %v1843
    %v1972 = vpack.c.b16 %v1909, %v1908
    %v1973 = vpack.c.b16 %v1911, %v1910
    %v1974 = vpack.c.b16 %v1913, %v1912
    %v1975 = vpack.c.b16 %v1915, %v1914
    %v1976 = vpack.c.b16 %v1917, %v1916
    %v1977 = vpack.c.b16 %v1919, %v1918
    %v1978 = vpack.c.b16 %v1921, %v1920
    %v1979 = vpack.c.b16 %v1923, %v1922
    %v1980 = vpack.c.b16 %v1925, %v1924
    %v1981 = vpack.c.b16 %v1927, %v1926
    %v1982 = vpack.c.b16 %v1929, %v1928
    %v1983 = vpack.c.b16 %v1931, %v1930
    %v1984 = vpack.c.b16 %v1933, %v1932
    %v1985 = vpack.c.b16 %v1935, %v1934
    %v1986 = vpack.c.b16 %v1937, %v1936
    %v1987 = vpack.c.b16 %v1939, %v1938
    %v1988 = vpack.c.b16 %v1941, %v1940
    %v1989 = vpack.c.b16 %v1943, %v1942
    %v1990 = vpack.c.b16 %v1945, %v1944
    %v1991 = vpack.c.b16 %v1947, %v1946
    %v1992 = vpack.c.b16 %v1949, %v1948
    %v1993 = vpack.c.b16 %v1951, %v1950
    %v1994 = vpack.c.b16 %v1953, %v1952
    %v1995 = vpack.c.b16 %v1955, %v1954
    %v1996 = vpack.c.b16 %v1957, %v1956
    %v1997 = vpack.c.b16 %v1959, %v1958
    %v1998 = vpack.c.b16 %v1961, %v1960
    %v1999 = vpack.c.b16 %v1963, %v1962
    %v2000 = vpack.c.b16 %v1965, %v1964
    %v2001 = vpack.c.b16 %v1967, %v1966
    %v2002 = vpack.c.b16 %v1969, %v1968
    %v2003 = vpack.c.b16 %v1971, %v1970
    %2036 = vmatprep.subr.bf16.mxu0 0
    %2037 = vmatpush1.bf16.msra.mxu0 %v1972
    %2038 = vmatprep.subr.bf16.mxu0 0
    %2039 = vmatpush1.bf16.msra.mxu0 %v1973
    %2040 = vmatprep.subr.bf16.mxu0 0
    %2041 = vmatpush1.bf16.msra.mxu0 %v1974
    %2042 = vmatprep.subr.bf16.mxu0 0
    %2043 = vmatpush1.bf16.msra.mxu0 %v1975
    %2044 = vmatprep.subr.bf16.mxu0 0
    %2045 = vmatpush1.bf16.msra.mxu0 %v1976
    %2046 = vmatprep.subr.bf16.mxu0 0
    %2047 = vmatpush1.bf16.msra.mxu0 %v1977
    %2048 = vmatprep.subr.bf16.mxu0 0
    %2049 = vmatpush1.bf16.msra.mxu0 %v1978
    %2050 = vmatprep.subr.bf16.mxu0 0
    %2051 = vmatpush1.bf16.msra.mxu0 %v1979
    %2052 = vmatprep.subr.bf16.mxu0 0
    %2053 = vmatpush1.bf16.msra.mxu0 %v1980
    %2054 = vmatprep.subr.bf16.mxu0 0
    %2055 = vmatpush1.bf16.msra.mxu0 %v1981
    %2056 = vmatprep.subr.bf16.mxu0 0
    %2057 = vmatpush1.bf16.msra.mxu0 %v1982
    %2058 = vmatprep.subr.bf16.mxu0 0
    %2059 = vmatpush1.bf16.msra.mxu0 %v1983
    %2060 = vmatprep.subr.bf16.mxu0 0
    %2061 = vmatpush1.bf16.msra.mxu0 %v1984
    %2062 = vmatprep.subr.bf16.mxu0 0
    %2063 = vmatpush1.bf16.msra.mxu0 %v1985
    %2064 = vmatprep.subr.bf16.mxu0 0
    %2065 = vmatpush1.bf16.msra.mxu0 %v1986
    %2066 = vmatprep.subr.bf16.mxu0 0
    %2067 = vmatpush1.bf16.msra.mxu0 %v1987
    %2068 = vmatprep.mubr.bf16.mxu0 %v1769
    %2069 = vmatmul.mubr.bf16.gmra.mrb[0].mxu0 %v1768
    %v2070 = vpop.f32.mrb[0].mxu0
    %v2071 = vadd.f32 0.0, %v2070
    %v2072 = vpop.f32.mrb[0].mxu0
    %v2073 = vpop.f32.mrb[0].mxu0
    %v2074 = vadd.f32 0.0, %v2073
    %v2075 = vpop.f32.mrb[0].mxu0
    %2076 = vmatprep.mubr.bf16.mxu0 %v1773
    %2077 = vmatmul.mubr.bf16.gmra.mrb[0].mxu0 %v1772
    %v2078 = vpop.f32.mrb[0].mxu0
    %v2079 = vadd.f32 0.0, %v2078
    %v2080 = vpop.f32.mrb[0].mxu0
    %v2081 = vpop.f32.mrb[0].mxu0
    %v2082 = vadd.f32 0.0, %v2081
    %v2083 = vpop.f32.mrb[0].mxu0
    %2084 = vdwg.mxu0
    %2085 = vmatprep.subr.bf16.mxu0 0
    %2086 = vmatpush1.bf16.msra.mxu0 %v1988
    %2087 = vmatprep.subr.bf16.mxu0 0
    %2088 = vmatpush1.bf16.msra.mxu0 %v1989
    %2089 = vmatprep.subr.bf16.mxu0 0
    %2090 = vmatpush1.bf16.msra.mxu0 %v1990
    %2091 = vmatprep.subr.bf16.mxu0 0
    %2092 = vmatpush1.bf16.msra.mxu0 %v1991
    %2093 = vmatprep.subr.bf16.mxu0 0
    %2094 = vmatpush1.bf16.msra.mxu0 %v1992
    %2095 = vmatprep.subr.bf16.mxu0 0
    %2096 = vmatpush1.bf16.msra.mxu0 %v1993
    %2097 = vmatprep.subr.bf16.mxu0 0
    %2098 = vmatpush1.bf16.msra.mxu0 %v1994
    %2099 = vmatprep.subr.bf16.mxu0 0
    %2100 = vmatpush1.bf16.msra.mxu0 %v1995
    %2101 = vmatprep.subr.bf16.mxu0 0
    %2102 = vmatpush1.bf16.msra.mxu0 %v1996
    %2103 = vmatprep.subr.bf16.mxu0 0
    %2104 = vmatpush1.bf16.msra.mxu0 %v1997
    %2105 = vmatprep.subr.bf16.mxu0 0
    %2106 = vmatpush1.bf16.msra.mxu0 %v1998
    %2107 = vmatprep.subr.bf16.mxu0 0
    %2108 = vmatpush1.bf16.msra.mxu0 %v1999
    %2109 = vmatprep.subr.bf16.mxu0 0
    %2110 = vmatpush1.bf16.msra.mxu0 %v2000
    %2111 = vmatprep.subr.bf16.mxu0 0
    %2112 = vmatpush1.bf16.msra.mxu0 %v2001
    %2113 = vmatprep.subr.bf16.mxu0 0
    %2114 = vmatpush1.bf16.msra.mxu0 %v2002
    %2115 = vmatprep.subr.bf16.mxu0 0
    %2116 = vmatpush1.bf16.msra.mxu0 %v2003
    %2117 = vmatprep.mubr.bf16.mxu0 %v1771
    %2118 = vmatmul.mubr.bf16.gmra.mrb[0].mxu0 %v1770
    %v2119 = vpop.f32.mrb[0].mxu0
    %v2120 = vadd.f32 %v2071, %v2119
    %v2121 = vpop.f32.mrb[0].mxu0
    %v2122 = vpop.f32.mrb[0].mxu0
    %v2123 = vadd.f32 %v2074, %v2122
    %v2124 = vpop.f32.mrb[0].mxu0
    %2125 = vmatprep.mubr.bf16.mxu0 %v1775
    %2126 = vmatmul.mubr.bf16.gmra.mrb[0].mxu0 %v1774
    %v2127 = vpop.f32.mrb[0].mxu0
    %v2128 = vadd.f32 %v2079, %v2127
    %v2129 = vpop.f32.mrb[0].mxu0
    %v2130 = vpop.f32.mrb[0].mxu0
    %v2131 = vadd.f32 %v2082, %v2130
    %v2132 = vpop.f32.mrb[0].mxu0
    %2133 = vdwg.mxu0
    %v2134 = vadd.f32 %v1776, %v2120
    %v2135 = vadd.f32 %v1777, %v2123
    %v2136 = vadd.f32 %v1778, %v2128
    %v2137 = vadd.f32 %v1779, %v2131
    %2138 = vst [vmem:[#allocation3] sm:$0xff] %v2134
    %2139 = vst [vmem:[#allocation3 + $0x8] sm:$0xff] %v2135
    %2140 = vst [vmem:[#allocation3 + $0x10] sm:$0xff] %v2136
    %2141 = vst [vmem:[#allocation3 + $0x18] sm:$0xff] %v2137
    // Predicated region
    $region94: #{tpu_custom_call.1} parent=1 // pred_check
      %p2142 = pneg %p137
    $region95: #{tpu_custom_call.1} parent=1 // pred_check_branch
      %2144 = sbr.rel (%p2142) target = $region97
    $region96: #{tpu_custom_call.1} parent=1 // pred_region
      %v2145 = vld [vmem:[#allocation15] sm:$0xf]
      %v2146 = vld [vmem:[#allocation15 + $0x4] sm:$0xf]
      %v2147 = vld [vmem:[#allocation15 + $0x8] sm:$0xf]
      %v2148 = vld [vmem:[#allocation15 + $0xc] sm:$0xf]
      %v2149 = vunpack.c.l.bf16 %v2145
      %v2150 = vunpack.c.l.bf16 %v2146
      %v2151 = vunpack.c.l.bf16 %v2147
      %v2152 = vunpack.c.l.bf16 %v2148
      %v2153 = vld [vmem:[#allocation3] sm:$0xff]
      %v2154 = vld [vmem:[#allocation3 + $0x8] sm:$0xff]
      %v2155 = vld [vmem:[#allocation3 + $0x10] sm:$0xff]
      %v2156 = vld [vmem:[#allocation3 + $0x18] sm:$0xff]
      %v2157 = vadd.f32 %v2149, %v2153
      %v2158 = vadd.f32 %v2150, %v2154
      %v2159 = vadd.f32 %v2151, %v2155
      %v2160 = vadd.f32 %v2152, %v2156
      %v2161 = vld [vmem:[%s15] sm:$0x1]
      %v2163 = vlaneseq
      %v2164 = vshrl.u32 %v2163, 7
      %v2165 = vsub.s32 0, %v2164
      %v2166 = vrot.slane %v2161, %v2165
      %v2168 = vadd.f32 %v2157, %v2166
      %v2169 = vadd.f32 %v2158, %v2166
      %v2170 = vadd.f32 %v2159, %v2166
      %v2171 = vadd.f32 %v2160, %v2166
      %v2172 = vpack.c.bf16 %v2169, %v2168
      %v2173 = vpack.c.bf16 %v2171, %v2170
      %v2176 = vunpack.c.l.b16 %v2172
      %v2177 = vunpack.c.h.b16 %v2172
      %v2178 = vunpack.c.l.b16 %v2173
      %v2179 = vunpack.c.h.b16 %v2173
      %v2180 = vpack.c.b16 %v2176, %v2176
      %v2181 = vpack.c.b16 %v2177, %v2177
      %v2182 = vpack.c.b16 %v2178, %v2178
      %v2183 = vpack.c.b16 %v2179, %v2179
      %2188 = vst [vmem:[#allocation15] sm:$0xf] %v2180
      %2189 = vst [vmem:[#allocation15 + $0x4] sm:$0xf] %v2181
      %2190 = vst [vmem:[#allocation15 + $0x8] sm:$0xf] %v2182
      %2191 = vst [vmem:[#allocation15 + $0xc] sm:$0xf] %v2183
    $region97: #{tpu_custom_call.1} parent=1 // pred_fallthru
      _
    // Predicated region
    $region98: #{tpu_custom_call.1} parent=1 // pred_check
      _
    $region99: #{tpu_custom_call.1} parent=1 // pred_check_branch
      %2193 = sbr.rel (0) target = $region101
    $region100: #{tpu_custom_call.1} parent=1 // pred_region
      %s2195 = ssub.s32 256, 256
      %2196 = vsyncadd [#allocation6], %s2195
      %s2197 = sshll.u32 [#allocation15], 4
      %s2198 = int_to_ptr.vmem [resolvable:$true] %s2197
      %2203 = dma.vmem_to_hbm [thread:$0]  %s2198, 256, %s16, [#allocation6], 64, 64, 4
    $region101: #{tpu_custom_call.1} parent=1 // pred_fallthru
      _
    // Predicated region
    $region102: #{tpu_custom_call.1} parent=1 // pred_check
      _
    $region103: #{tpu_custom_call.1} parent=1 // pred_check_branch
      %2205 = sbr.rel (0) target = $region105
    $region104: #{tpu_custom_call.1} parent=1 // pred_region
      %2206 = dma.done [#allocation6], 256
    $region105: #{tpu_custom_call.1} parent=1 // pred_fallthru
      _
    %2207 = vsyncpa [#allocation5], 1
    %2208 = vsyncpa [#allocation8], 1
    %2209 = vsyncpa [#allocation11], 1
    %2210 = vsyncpa [#allocation14], 1
    %2211 = vsyncpa [#allocation6], 1

</llo_original>
